<compile_context>
chip_gen: v7x
topology: tpu7x:2x2x1
jax: 0.10.0
libtpu: 0.0.40
codegen_flags: <defaults>
</compile_context>

<pallas_src>
import functools

import numpy as np
import jax
import jax.numpy as jnp
from jax.experimental import pallas as pl
from jax.experimental.pallas import tpu as pltpu


# ----------------------------- fused kernel -----------------------------
def fused_kernel(xcat_ref, wih_ref, whh_ref, b_ref,
                 ws11_ref, dd11_ref, ws22_ref,
                 whead_ref, kexp_ref, csel_ref,
                 out_ref, *, batch, seq):
    B, S = batch, seq
    H2 = whh_ref.shape[0]              # 2 * LSTM_hidden_size
    H = H2 // 2
    assert xcat_ref.shape[0] == S * B
    assert wih_ref.shape[1] == 4 * H2 and whh_ref.shape[1] == 4 * H2

    # ---------------- bidirectional LSTM ----------------
    # Hoisted input projection: both directions, all timesteps, one matmul.
    # xcat rows are time-major: row t*B + b = [x[b, t], x[b, S-1-t]]  (2E features).
    gx = jnp.dot(xcat_ref[...], wih_ref[...],
                 preferred_element_type=jnp.float32) + b_ref[...]       # [S*B, 8H]

    whh = whh_ref[...]                                                  # [2H, 8H] blockdiag
    h = jnp.zeros((B, H2), jnp.float32)                                 # [h_fwd | h_rev]
    cs = jnp.zeros((B, H2), jnp.float32)
    steps = []
    for t in range(S):                                                  # S static -> unrolled
        gates = gx[t * B:(t + 1) * B, :] + jnp.dot(
            h, whh, preferred_element_type=jnp.float32)                 # [B, 8H]
        # gate-grouped columns: [ i | f | g | o ], each 2H wide = [fwd, rev]
        i = jax.nn.sigmoid(gates[:, 0 * H2:1 * H2])
        f = jax.nn.sigmoid(gates[:, 1 * H2:2 * H2])
        g = jnp.tanh(gates[:, 2 * H2:3 * H2])
        o = jax.nn.sigmoid(gates[:, 3 * H2:4 * H2])
        cs = f * cs + i * g
        h = o * jnp.tanh(cs)
        steps.append(h)

    # Batch-major LSTM output [B, S, 2H]: fwd half from loop step t, rev half from step S-1-t.
    # (two stacks + two lane slices + one concat instead of per-(b,t) row slices/concats)
    fwd = jnp.stack(steps, axis=1)[:, :, :H]                            # [B, S, H]
    rev = jnp.stack(steps[::-1], axis=1)[:, :, H:]                      # [B, S, H]
    out_bm = jnp.concatenate([fwd, rev], axis=-1)                       # [B, S, 2H]
    flat = out_bm.reshape(B * S, H2)                                    # [B*S, 2H]
    flat_bf = flat.astype(jnp.bfloat16)

    # ---------------- attention (whole batch at once, 350 padded to 384 lanes) ----------------
    aw = jnp.dot(flat_bf, ws11_ref[...], preferred_element_type=jnp.float32)    # [B*S, 384]
    gt = jnp.dot(aw.astype(jnp.bfloat16), dd11_ref[...],
                 preferred_element_type=jnp.float32)                            # [B*S, 384]
    aw = gt * aw + gt                                                           # gating
    sc = jnp.dot(aw.astype(jnp.bfloat16), ws22_ref[...],
                 preferred_element_type=jnp.float32)                            # [B*S, 30]

    # softmax over the sequence axis (== torch softmax(dim=2) after permute(0,2,1))
    sc3 = sc.reshape(B, S, -1)                                                  # [B, S, 30]
    mx = jnp.max(sc3, axis=1, keepdims=True)
    ex = jnp.exp(sc3 - mx)
    attn = ex * pl.reciprocal(jnp.sum(ex, axis=1, keepdims=True), approx=False) # [B, S, 30]
    attn2 = attn.reshape(B * S, -1)                                             # [B*S, 30]

    # ---------------- folded head (fc_layer @ label applied before attention weighting) ------
    # hw[(b,s), k*C+c]   = sum_d out[b,s,d] * W_head[k*2H+d, c]
    # aexp[(b,s), k*C+c] = attn[b,s,k]                     (0/1 lane-expand constant)
    # perc[(b,s), c]     = sum_k attn[b,s,k] * hw[...]     (0/1 class-select constant)
    # out[b, c]          = sum_s perc[(b,s), c]            == hidden.view(-1,30*2H) @ fc^T @ label^T
    hw = jnp.dot(flat_bf, whead_ref[...], preferred_element_type=jnp.float32)   # [B*S, K*C]
    aexp = jnp.dot(attn2, kexp_ref[...], preferred_element_type=jnp.float32)    # [B*S, K*C]
    perc = jnp.dot(aexp * hw, csel_ref[...], preferred_element_type=jnp.float32)  # [B*S, C]
    out = jnp.sum(perc.reshape(B, S, -1), axis=1)                               # [B, C]
    out_ref[...] = out.astype(out_ref.dtype)


# ----------------------------- wrapper -----------------------------
def self_dd_attn_forward(x, pp):
    B, S, E = x.shape
    C = pp["c_select"].shape[1]

    # Forward-time and time-reversed inputs side by side, time-major -> one hoisted
    # input projection in the kernel covers both LSTM directions and all timesteps.
    xcat = jnp.concatenate([x, x[:, ::-1, :]], axis=-1)                 # [B, S, 2E]
    xcat_tm = jnp.transpose(xcat, (1, 0, 2)).reshape(S * B, 2 * E)      # [S*B, 2E]

    vmem = pl.BlockSpec(memory_space=pltpu.MemorySpace.VMEM)
    return pl.pallas_call(
        functools.partial(fused_kernel, batch=B, seq=S),
        out_shape=jax.ShapeDtypeStruct((B, C), jnp.float32),
        in_specs=[vmem] * 10,                 # everything is tiny and VMEM-resident (~0.5 MB)
        out_specs=vmem,
    )(xcat_tm, pp["w_ih_blk"], pp["w_hh_blk"], pp["b_blk"],
      pp["ws11"], pp["dd11"], pp["ws22"],
      pp["w_head2"], pp["k_expand"], pp["c_select"])


# ------------------ one-time parameter packing (pre-transpose / cast / fuse) ------------------
def pack_params(p):
    H = p["w_hh_f"].shape[1]
    E = p["w_ih_f"].shape[1]
    H2 = 2 * H
    K = p["ws22"].shape[0]                       # 30 attention hops
    C = p["label_w"].shape[0]                    # num_classes
    A = p["ws11"].shape[0]                       # 350
    AP = ((A + 127) // 128) * 128                # 350 -> 384 (lane-dense)

    def gate_group(wf, wr):
        # wf/wr: [..., 4H] in PyTorch gate order (i, f, g, o). Interleave into gate-grouped
        # columns [i_f|i_r|f_f|f_r|g_f|g_r|o_f|o_r] so in-kernel gate slices (each 2H wide)
        # line up with the packed hidden/cell state layout [h_fwd | h_rev].
        cols = []
        for k in range(4):
            cols.append(wf[..., k * H:(k + 1) * H])
            cols.append(wr[..., k * H:(k + 1) * H])
        return jnp.concatenate(cols, axis=-1)

    zE = jnp.zeros((E, 4 * H), jnp.float32)
    zH = jnp.zeros((H, 4 * H), jnp.float32)
    # block-diagonal input / hidden weights (fwd rows act on x[t] / h_fwd, rev rows on
    # x[S-1-t] / h_rev), gate-grouped columns
    w_ih_blk = gate_group(jnp.concatenate([p["w_ih_f"].T, zE], axis=0),
                          jnp.concatenate([zE, p["w_ih_r"].T], axis=0))      # [2E, 8H]
    w_hh_blk = gate_group(jnp.concatenate([p["w_hh_f"].T, zH], axis=0),
                          jnp.concatenate([zH, p["w_hh_r"].T], axis=0))      # [2H, 8H]
    b_blk = gate_group((p["b_ih_f"] + p["b_hh_f"]).reshape(1, 4 * H),
                       (p["b_ih_r"] + p["b_hh_r"]).reshape(1, 4 * H))        # [1, 8H]

    def pad2(x, rows, cols):                      # zero-pad a 2-D matrix (pads stay exact zeros)
        return jnp.zeros((rows, cols), x.dtype).at[:x.shape[0], :x.shape[1]].set(x)

    ws11 = pad2(p["ws11"].T, H2, AP).astype(jnp.bfloat16)        # [2H, 384]
    dd11 = pad2(p["dd11"].T, AP, AP).astype(jnp.bfloat16)        # [384, 384]
    ws22 = pad2(p["ws22"].T, AP, K).astype(jnp.bfloat16)         # [384, 30]

    # Exact f32 fold of fc_layer then label (no nonlinearity between them), cast to bf16 once,
    # and rearranged so the head applies to the LSTM output BEFORE the attention weighting:
    #   w_head2[d, k*C + c] = (fc_w^T @ label_w^T)[k*2H + d, c]
    w_head = p["fc_w"].T.astype(jnp.float32) @ p["label_w"].T.astype(jnp.float32)   # [K*2H, C]
    w_head2 = jnp.transpose(w_head.reshape(K, H2, C), (1, 0, 2)) \
                 .reshape(H2, K * C).astype(jnp.bfloat16)                           # [2H, K*C]

    # 0/1 pack-time constants: lane-expand the attention weights by C, and sum over k per class.
    k_expand = jnp.kron(jnp.eye(K, dtype=jnp.float32), jnp.ones((1, C), jnp.float32))  # [K, K*C]
    c_select = jnp.kron(jnp.ones((K, 1), jnp.float32), jnp.eye(C, dtype=jnp.float32))  # [K*C, C]

    return {
        "w_ih_blk": w_ih_blk,                            # f32 (tiny; keeps recurrence exact)
        "w_hh_blk": w_hh_blk,                            # f32
        "b_blk": b_blk,                                  # f32
        "ws11": ws11,                                    # bf16 [2H, 384]
        "dd11": dd11,                                    # bf16 [384, 384]
        "ws22": ws22,                                    # bf16 [384, 30]
        "w_head2": w_head2,                              # bf16 [2H, 30*C]  folded fc+label head
        "k_expand": k_expand,                            # f32 constant
        "c_select": c_select,                            # f32 constant
    }


# -------------------- deterministic parameter init (PyTorch-style uniform) --------------------
def init_params(key, E, H, C):
    def u(k, shape, fan_in):
        bound = 1.0 / np.sqrt(fan_in)
        return jax.random.uniform(k, shape, jnp.float32, -bound, bound)

    ks = iter(jax.random.split(key, 16))
    p = {}
    # LSTM (PyTorch layout: weight_ih [4H, E], weight_hh [4H, H], gate order i,f,g,o)
    p["w_ih_f"] = u(next(ks), (4 * H, E), H)
    p["w_hh_f"] = u(next(ks), (4 * H, H), H)
    p["b_ih_f"] = u(next(ks), (4 * H,), H)
    p["b_hh_f"] = u(next(ks), (4 * H,), H)
    p["w_ih_r"] = u(next(ks), (4 * H, E), H)
    p["w_hh_r"] = u(next(ks), (4 * H, H), H)
    p["b_ih_r"] = u(next(ks), (4 * H,), H)
    p["b_hh_r"] = u(next(ks), (4 * H,), H)
    # attention / head (nn.Linear layout: [out_features, in_features], bias=False)
    p["ws11"] = u(next(ks), (350, 2 * H), 2 * H)
    p["dd11"] = u(next(ks), (350, 350), 350)
    p["ws22"] = u(next(ks), (30, 350), 350)
    p["fc_w"] = u(next(ks), (2000, 30 * 2 * H), 30 * 2 * H)
    p["label_w"] = u(next(ks), (C, 2000), 2000)
    return p


# -------------------- pure-JAX reference (f32, PyTorch-layout params) --------------------
def ref_forward(x, params):
    H = params["w_hh_f"].shape[1]

    def run_dir(xseq, w_ih, w_hh, b_ih, b_hh):
        B, S, _ = xseq.shape
        h = jnp.zeros((B, H), jnp.float32)
        c = jnp.zeros((B, H), jnp.float32)
        outs = []
        for t in range(S):
            gates = xseq[:, t, :] @ w_ih.T + h @ w_hh.T + b_ih + b_hh
            i, f, g, o = jnp.split(gates, 4, axis=1)
            i = jax.nn.sigmoid(i); f = jax.nn.sigmoid(f)
            g = jnp.tanh(g); o = jax.nn.sigmoid(o)
            c = f * c + i * g
            h = o * jnp.tanh(c)
            outs.append(h)
        return jnp.stack(outs, axis=1)

    out_f = run_dir(x, params["w_ih_f"], params["w_hh_f"], params["b_ih_f"], params["b_hh_f"])
    out_r = run_dir(x[:, ::-1, :], params["w_ih_r"], params["w_hh_r"],
                    params["b_ih_r"], params["b_hh_r"])[:, ::-1, :]
    out = jnp.concatenate([out_f, out_r], axis=-1)                       # [B, S, 2H]

    a = out @ params["ws11"].T
    g = a @ params["dd11"].T
    a = g * a + g
    s = a @ params["ws22"].T                                             # [B, S, 30]
    attn = jax.nn.softmax(jnp.transpose(s, (0, 2, 1)), axis=2)           # [B, 30, S]
    hidden = jnp.einsum("bks,bsd->bkd", attn, out)                       # [B, 30, 2H]
    fc = hidden.reshape(hidden.shape[0], -1) @ params["fc_w"].T
    return fc @ params["label_w"].T


if __name__ == "__main__":
    B, S, E, H, C = 2, 8, 32, 32, 4   # batch, seq, GloVe_embedding_length, LSTM_hidden_size, num_classes
    key = jax.random.PRNGKey(0)
    k_x, k_p = jax.random.split(key)
    x = jax.random.normal(k_x, (B, S, E), jnp.float32)
    params = init_params(k_p, E, H, C)
    packed = pack_params(params)      # one-time transpose / padding / head-fold / bf16 cast

    fwd = jax.jit(self_dd_attn_forward)
    out = jax.block_until_ready(fwd(x, packed))
    ref = jax.block_until_ready(ref_forward(x, params))
    # bf16 attention/head weights with f32 accumulation -> ~1% relative error budget
    np.testing.assert_allclose(np.asarray(out), np.asarray(ref), rtol=5e-2, atol=2e-2)
    print("KERNEL_OK")
</pallas_src>

<mosaic_0001>
module attributes {stable_mosaic.version = 11 : i64} {
  func.func @fused_kernel(%arg0: memref<16x64xf32, #tpu.memory_space<vmem>>, %arg1: memref<64x256xf32, #tpu.memory_space<vmem>>, %arg2: memref<64x256xf32, #tpu.memory_space<vmem>>, %arg3: memref<1x256xf32, #tpu.memory_space<vmem>>, %arg4: memref<64x384xbf16, #tpu.memory_space<vmem>>, %arg5: memref<384x384xbf16, #tpu.memory_space<vmem>>, %arg6: memref<384x30xbf16, #tpu.memory_space<vmem>>, %arg7: memref<64x120xbf16, #tpu.memory_space<vmem>>, %arg8: memref<30x120xf32, #tpu.memory_space<vmem>>, %arg9: memref<120x4xf32, #tpu.memory_space<vmem>>, %arg10: memref<2x4xf32, #tpu.memory_space<vmem>>) attributes {dimension_semantics = [], scalar_prefetch = 0 : i64, scratch_operands = 0 : i64, tpu.core_type = #tpu.core_type<tc>} {
    %c0 = arith.constant 0 : index
    %c0_0 = arith.constant 0 : index
    %0 = vector.load %arg0[%c0, %c0_0] : memref<16x64xf32, #tpu.memory_space<vmem>>, vector<16x64xf32>
    %c0_1 = arith.constant 0 : index
    %c0_2 = arith.constant 0 : index
    %1 = vector.load %arg1[%c0_1, %c0_2] : memref<64x256xf32, #tpu.memory_space<vmem>>, vector<64x256xf32>
    %cst = arith.constant dense<0.000000e+00> : vector<16x256xf32>
    %2 = tpu.matmul %0, %1, %cst {dimension_numbers = #tpu.dot_dimension_numbers<[1], [0], [0], [1], [0, 0, 1, 1], [], []>} : vector<16x64xf32>, vector<64x256xf32>, vector<16x256xf32> -> vector<16x256xf32>
    %c0_3 = arith.constant 0 : index
    %c0_4 = arith.constant 0 : index
    %3 = vector.load %arg3[%c0_3, %c0_4] : memref<1x256xf32, #tpu.memory_space<vmem>>, vector<1x256xf32>
    %4 = vector.broadcast %3 : vector<1x256xf32> to vector<16x256xf32>
    %5 = arith.addf %2, %4 : vector<16x256xf32>
    %c0_5 = arith.constant 0 : index
    %c0_6 = arith.constant 0 : index
    %6 = vector.load %arg2[%c0_5, %c0_6] : memref<64x256xf32, #tpu.memory_space<vmem>>, vector<64x256xf32>
    %cst_7 = arith.constant 0.000000e+00 : f32
    %7 = vector.broadcast %cst_7 : f32 to vector<2x64xf32>
    %cst_8 = arith.constant 0.000000e+00 : f32
    %8 = vector.broadcast %cst_8 : f32 to vector<2x64xf32>
    %9 = vector.extract_strided_slice %5 {offsets = [0, 0], sizes = [2, 256], strides = [1, 1]} : vector<16x256xf32> to vector<2x256xf32>
    %cst_9 = arith.constant dense<0.000000e+00> : vector<2x256xf32>
    %10 = tpu.matmul %7, %6, %cst_9 {dimension_numbers = #tpu.dot_dimension_numbers<[1], [0], [0], [1], [0, 0, 1, 1], [], []>} : vector<2x64xf32>, vector<64x256xf32>, vector<2x256xf32> -> vector<2x256xf32>
    %11 = arith.addf %9, %10 : vector<2x256xf32>
    %12 = vector.extract_strided_slice %11 {offsets = [0, 0], sizes = [2, 64], strides = [1, 1]} : vector<2x256xf32> to vector<2x64xf32>
    %13 = arith.negf %12 : vector<2x64xf32>
    %14 = math.exp %13 : vector<2x64xf32>
    %cst_10 = arith.constant 1.000000e+00 : f32
    %15 = vector.broadcast %cst_10 : f32 to vector<2x64xf32>
    %16 = arith.addf %15, %14 : vector<2x64xf32>
    %17 = arith.divf %15, %16 : vector<2x64xf32>
    %18 = vector.extract_strided_slice %11 {offsets = [0, 64], sizes = [2, 64], strides = [1, 1]} : vector<2x256xf32> to vector<2x64xf32>
    %19 = arith.negf %18 : vector<2x64xf32>
    %20 = math.exp %19 : vector<2x64xf32>
    %cst_11 = arith.constant 1.000000e+00 : f32
    %21 = vector.broadcast %cst_11 : f32 to vector<2x64xf32>
    %22 = arith.addf %21, %20 : vector<2x64xf32>
    %23 = arith.divf %21, %22 : vector<2x64xf32>
    %24 = vector.extract_strided_slice %11 {offsets = [0, 128], sizes = [2, 64], strides = [1, 1]} : vector<2x256xf32> to vector<2x64xf32>
    %25 = math.tanh %24 : vector<2x64xf32>
    %26 = vector.extract_strided_slice %11 {offsets = [0, 192], sizes = [2, 64], strides = [1, 1]} : vector<2x256xf32> to vector<2x64xf32>
    %27 = arith.negf %26 : vector<2x64xf32>
    %28 = math.exp %27 : vector<2x64xf32>
    %cst_12 = arith.constant 1.000000e+00 : f32
    %29 = vector.broadcast %cst_12 : f32 to vector<2x64xf32>
    %30 = arith.addf %29, %28 : vector<2x64xf32>
    %31 = arith.divf %29, %30 : vector<2x64xf32>
    %32 = arith.mulf %23, %8 : vector<2x64xf32>
    %33 = arith.mulf %17, %25 : vector<2x64xf32>
    %34 = arith.addf %32, %33 : vector<2x64xf32>
    %35 = math.tanh %34 : vector<2x64xf32>
    %36 = arith.mulf %31, %35 : vector<2x64xf32>
    %37 = vector.extract_strided_slice %5 {offsets = [2, 0], sizes = [2, 256], strides = [1, 1]} : vector<16x256xf32> to vector<2x256xf32>
    %cst_13 = arith.constant dense<0.000000e+00> : vector<2x256xf32>
    %38 = tpu.matmul %36, %6, %cst_13 {dimension_numbers = #tpu.dot_dimension_numbers<[1], [0], [0], [1], [0, 0, 1, 1], [], []>} : vector<2x64xf32>, vector<64x256xf32>, vector<2x256xf32> -> vector<2x256xf32>
    %39 = arith.addf %37, %38 : vector<2x256xf32>
    %40 = vector.extract_strided_slice %39 {offsets = [0, 0], sizes = [2, 64], strides = [1, 1]} : vector<2x256xf32> to vector<2x64xf32>
    %41 = arith.negf %40 : vector<2x64xf32>
    %42 = math.exp %41 : vector<2x64xf32>
    %cst_14 = arith.constant 1.000000e+00 : f32
    %43 = vector.broadcast %cst_14 : f32 to vector<2x64xf32>
    %44 = arith.addf %43, %42 : vector<2x64xf32>
    %45 = arith.divf %43, %44 : vector<2x64xf32>
    %46 = vector.extract_strided_slice %39 {offsets = [0, 64], sizes = [2, 64], strides = [1, 1]} : vector<2x256xf32> to vector<2x64xf32>
    %47 = arith.negf %46 : vector<2x64xf32>
    %48 = math.exp %47 : vector<2x64xf32>
    %cst_15 = arith.constant 1.000000e+00 : f32
    %49 = vector.broadcast %cst_15 : f32 to vector<2x64xf32>
    %50 = arith.addf %49, %48 : vector<2x64xf32>
    %51 = arith.divf %49, %50 : vector<2x64xf32>
    %52 = vector.extract_strided_slice %39 {offsets = [0, 128], sizes = [2, 64], strides = [1, 1]} : vector<2x256xf32> to vector<2x64xf32>
    %53 = math.tanh %52 : vector<2x64xf32>
    %54 = vector.extract_strided_slice %39 {offsets = [0, 192], sizes = [2, 64], strides = [1, 1]} : vector<2x256xf32> to vector<2x64xf32>
    %55 = arith.negf %54 : vector<2x64xf32>
    %56 = math.exp %55 : vector<2x64xf32>
    %cst_16 = arith.constant 1.000000e+00 : f32
    %57 = vector.broadcast %cst_16 : f32 to vector<2x64xf32>
    %58 = arith.addf %57, %56 : vector<2x64xf32>
    %59 = arith.divf %57, %58 : vector<2x64xf32>
    %60 = arith.mulf %51, %34 : vector<2x64xf32>
    %61 = arith.mulf %45, %53 : vector<2x64xf32>
    %62 = arith.addf %60, %61 : vector<2x64xf32>
    %63 = math.tanh %62 : vector<2x64xf32>
    %64 = arith.mulf %59, %63 : vector<2x64xf32>
    %65 = vector.extract_strided_slice %5 {offsets = [4, 0], sizes = [2, 256], strides = [1, 1]} : vector<16x256xf32> to vector<2x256xf32>
    %cst_17 = arith.constant dense<0.000000e+00> : vector<2x256xf32>
    %66 = tpu.matmul %64, %6, %cst_17 {dimension_numbers = #tpu.dot_dimension_numbers<[1], [0], [0], [1], [0, 0, 1, 1], [], []>} : vector<2x64xf32>, vector<64x256xf32>, vector<2x256xf32> -> vector<2x256xf32>
    %67 = arith.addf %65, %66 : vector<2x256xf32>
    %68 = vector.extract_strided_slice %67 {offsets = [0, 0], sizes = [2, 64], strides = [1, 1]} : vector<2x256xf32> to vector<2x64xf32>
    %69 = arith.negf %68 : vector<2x64xf32>
    %70 = math.exp %69 : vector<2x64xf32>
    %cst_18 = arith.constant 1.000000e+00 : f32
    %71 = vector.broadcast %cst_18 : f32 to vector<2x64xf32>
    %72 = arith.addf %71, %70 : vector<2x64xf32>
    %73 = arith.divf %71, %72 : vector<2x64xf32>
    %74 = vector.extract_strided_slice %67 {offsets = [0, 64], sizes = [2, 64], strides = [1, 1]} : vector<2x256xf32> to vector<2x64xf32>
    %75 = arith.negf %74 : vector<2x64xf32>
    %76 = math.exp %75 : vector<2x64xf32>
    %cst_19 = arith.constant 1.000000e+00 : f32
    %77 = vector.broadcast %cst_19 : f32 to vector<2x64xf32>
    %78 = arith.addf %77, %76 : vector<2x64xf32>
    %79 = arith.divf %77, %78 : vector<2x64xf32>
    %80 = vector.extract_strided_slice %67 {offsets = [0, 128], sizes = [2, 64], strides = [1, 1]} : vector<2x256xf32> to vector<2x64xf32>
    %81 = math.tanh %80 : vector<2x64xf32>
    %82 = vector.extract_strided_slice %67 {offsets = [0, 192], sizes = [2, 64], strides = [1, 1]} : vector<2x256xf32> to vector<2x64xf32>
    %83 = arith.negf %82 : vector<2x64xf32>
    %84 = math.exp %83 : vector<2x64xf32>
    %cst_20 = arith.constant 1.000000e+00 : f32
    %85 = vector.broadcast %cst_20 : f32 to vector<2x64xf32>
    %86 = arith.addf %85, %84 : vector<2x64xf32>
    %87 = arith.divf %85, %86 : vector<2x64xf32>
    %88 = arith.mulf %79, %62 : vector<2x64xf32>
    %89 = arith.mulf %73, %81 : vector<2x64xf32>
    %90 = arith.addf %88, %89 : vector<2x64xf32>
    %91 = math.tanh %90 : vector<2x64xf32>
    %92 = arith.mulf %87, %91 : vector<2x64xf32>
    %93 = vector.extract_strided_slice %5 {offsets = [6, 0], sizes = [2, 256], strides = [1, 1]} : vector<16x256xf32> to vector<2x256xf32>
    %cst_21 = arith.constant dense<0.000000e+00> : vector<2x256xf32>
    %94 = tpu.matmul %92, %6, %cst_21 {dimension_numbers = #tpu.dot_dimension_numbers<[1], [0], [0], [1], [0, 0, 1, 1], [], []>} : vector<2x64xf32>, vector<64x256xf32>, vector<2x256xf32> -> vector<2x256xf32>
    %95 = arith.addf %93, %94 : vector<2x256xf32>
    %96 = vector.extract_strided_slice %95 {offsets = [0, 0], sizes = [2, 64], strides = [1, 1]} : vector<2x256xf32> to vector<2x64xf32>
    %97 = arith.negf %96 : vector<2x64xf32>
    %98 = math.exp %97 : vector<2x64xf32>
    %cst_22 = arith.constant 1.000000e+00 : f32
    %99 = vector.broadcast %cst_22 : f32 to vector<2x64xf32>
    %100 = arith.addf %99, %98 : vector<2x64xf32>
    %101 = arith.divf %99, %100 : vector<2x64xf32>
    %102 = vector.extract_strided_slice %95 {offsets = [0, 64], sizes = [2, 64], strides = [1, 1]} : vector<2x256xf32> to vector<2x64xf32>
    %103 = arith.negf %102 : vector<2x64xf32>
    %104 = math.exp %103 : vector<2x64xf32>
    %cst_23 = arith.constant 1.000000e+00 : f32
    %105 = vector.broadcast %cst_23 : f32 to vector<2x64xf32>
    %106 = arith.addf %105, %104 : vector<2x64xf32>
    %107 = arith.divf %105, %106 : vector<2x64xf32>
    %108 = vector.extract_strided_slice %95 {offsets = [0, 128], sizes = [2, 64], strides = [1, 1]} : vector<2x256xf32> to vector<2x64xf32>
    %109 = math.tanh %108 : vector<2x64xf32>
    %110 = vector.extract_strided_slice %95 {offsets = [0, 192], sizes = [2, 64], strides = [1, 1]} : vector<2x256xf32> to vector<2x64xf32>
    %111 = arith.negf %110 : vector<2x64xf32>
    %112 = math.exp %111 : vector<2x64xf32>
    %cst_24 = arith.constant 1.000000e+00 : f32
    %113 = vector.broadcast %cst_24 : f32 to vector<2x64xf32>
    %114 = arith.addf %113, %112 : vector<2x64xf32>
    %115 = arith.divf %113, %114 : vector<2x64xf32>
    %116 = arith.mulf %107, %90 : vector<2x64xf32>
    %117 = arith.mulf %101, %109 : vector<2x64xf32>
    %118 = arith.addf %116, %117 : vector<2x64xf32>
    %119 = math.tanh %118 : vector<2x64xf32>
    %120 = arith.mulf %115, %119 : vector<2x64xf32>
    %121 = vector.extract_strided_slice %5 {offsets = [8, 0], sizes = [2, 256], strides = [1, 1]} : vector<16x256xf32> to vector<2x256xf32>
    %cst_25 = arith.constant dense<0.000000e+00> : vector<2x256xf32>
    %122 = tpu.matmul %120, %6, %cst_25 {dimension_numbers = #tpu.dot_dimension_numbers<[1], [0], [0], [1], [0, 0, 1, 1], [], []>} : vector<2x64xf32>, vector<64x256xf32>, vector<2x256xf32> -> vector<2x256xf32>
    %123 = arith.addf %121, %122 : vector<2x256xf32>
    %124 = vector.extract_strided_slice %123 {offsets = [0, 0], sizes = [2, 64], strides = [1, 1]} : vector<2x256xf32> to vector<2x64xf32>
    %125 = arith.negf %124 : vector<2x64xf32>
    %126 = math.exp %125 : vector<2x64xf32>
    %cst_26 = arith.constant 1.000000e+00 : f32
    %127 = vector.broadcast %cst_26 : f32 to vector<2x64xf32>
    %128 = arith.addf %127, %126 : vector<2x64xf32>
    %129 = arith.divf %127, %128 : vector<2x64xf32>
    %130 = vector.extract_strided_slice %123 {offsets = [0, 64], sizes = [2, 64], strides = [1, 1]} : vector<2x256xf32> to vector<2x64xf32>
    %131 = arith.negf %130 : vector<2x64xf32>
    %132 = math.exp %131 : vector<2x64xf32>
    %cst_27 = arith.constant 1.000000e+00 : f32
    %133 = vector.broadcast %cst_27 : f32 to vector<2x64xf32>
    %134 = arith.addf %133, %132 : vector<2x64xf32>
    %135 = arith.divf %133, %134 : vector<2x64xf32>
    %136 = vector.extract_strided_slice %123 {offsets = [0, 128], sizes = [2, 64], strides = [1, 1]} : vector<2x256xf32> to vector<2x64xf32>
    %137 = math.tanh %136 : vector<2x64xf32>
    %138 = vector.extract_strided_slice %123 {offsets = [0, 192], sizes = [2, 64], strides = [1, 1]} : vector<2x256xf32> to vector<2x64xf32>
    %139 = arith.negf %138 : vector<2x64xf32>
    %140 = math.exp %139 : vector<2x64xf32>
    %cst_28 = arith.constant 1.000000e+00 : f32
    %141 = vector.broadcast %cst_28 : f32 to vector<2x64xf32>
    %142 = arith.addf %141, %140 : vector<2x64xf32>
    %143 = arith.divf %141, %142 : vector<2x64xf32>
    %144 = arith.mulf %135, %118 : vector<2x64xf32>
    %145 = arith.mulf %129, %137 : vector<2x64xf32>
    %146 = arith.addf %144, %145 : vector<2x64xf32>
    %147 = math.tanh %146 : vector<2x64xf32>
    %148 = arith.mulf %143, %147 : vector<2x64xf32>
    %149 = vector.extract_strided_slice %5 {offsets = [10, 0], sizes = [2, 256], strides = [1, 1]} : vector<16x256xf32> to vector<2x256xf32>
    %cst_29 = arith.constant dense<0.000000e+00> : vector<2x256xf32>
    %150 = tpu.matmul %148, %6, %cst_29 {dimension_numbers = #tpu.dot_dimension_numbers<[1], [0], [0], [1], [0, 0, 1, 1], [], []>} : vector<2x64xf32>, vector<64x256xf32>, vector<2x256xf32> -> vector<2x256xf32>
    %151 = arith.addf %149, %150 : vector<2x256xf32>
    %152 = vector.extract_strided_slice %151 {offsets = [0, 0], sizes = [2, 64], strides = [1, 1]} : vector<2x256xf32> to vector<2x64xf32>
    %153 = arith.negf %152 : vector<2x64xf32>
    %154 = math.exp %153 : vector<2x64xf32>
    %cst_30 = arith.constant 1.000000e+00 : f32
    %155 = vector.broadcast %cst_30 : f32 to vector<2x64xf32>
    %156 = arith.addf %155, %154 : vector<2x64xf32>
    %157 = arith.divf %155, %156 : vector<2x64xf32>
    %158 = vector.extract_strided_slice %151 {offsets = [0, 64], sizes = [2, 64], strides = [1, 1]} : vector<2x256xf32> to vector<2x64xf32>
    %159 = arith.negf %158 : vector<2x64xf32>
    %160 = math.exp %159 : vector<2x64xf32>
    %cst_31 = arith.constant 1.000000e+00 : f32
    %161 = vector.broadcast %cst_31 : f32 to vector<2x64xf32>
    %162 = arith.addf %161, %160 : vector<2x64xf32>
    %163 = arith.divf %161, %162 : vector<2x64xf32>
    %164 = vector.extract_strided_slice %151 {offsets = [0, 128], sizes = [2, 64], strides = [1, 1]} : vector<2x256xf32> to vector<2x64xf32>
    %165 = math.tanh %164 : vector<2x64xf32>
    %166 = vector.extract_strided_slice %151 {offsets = [0, 192], sizes = [2, 64], strides = [1, 1]} : vector<2x256xf32> to vector<2x64xf32>
    %167 = arith.negf %166 : vector<2x64xf32>
    %168 = math.exp %167 : vector<2x64xf32>
    %cst_32 = arith.constant 1.000000e+00 : f32
    %169 = vector.broadcast %cst_32 : f32 to vector<2x64xf32>
    %170 = arith.addf %169, %168 : vector<2x64xf32>
    %171 = arith.divf %169, %170 : vector<2x64xf32>
    %172 = arith.mulf %163, %146 : vector<2x64xf32>
    %173 = arith.mulf %157, %165 : vector<2x64xf32>
    %174 = arith.addf %172, %173 : vector<2x64xf32>
    %175 = math.tanh %174 : vector<2x64xf32>
    %176 = arith.mulf %171, %175 : vector<2x64xf32>
    %177 = vector.extract_strided_slice %5 {offsets = [12, 0], sizes = [2, 256], strides = [1, 1]} : vector<16x256xf32> to vector<2x256xf32>
    %cst_33 = arith.constant dense<0.000000e+00> : vector<2x256xf32>
    %178 = tpu.matmul %176, %6, %cst_33 {dimension_numbers = #tpu.dot_dimension_numbers<[1], [0], [0], [1], [0, 0, 1, 1], [], []>} : vector<2x64xf32>, vector<64x256xf32>, vector<2x256xf32> -> vector<2x256xf32>
    %179 = arith.addf %177, %178 : vector<2x256xf32>
    %180 = vector.extract_strided_slice %179 {offsets = [0, 0], sizes = [2, 64], strides = [1, 1]} : vector<2x256xf32> to vector<2x64xf32>
    %181 = arith.negf %180 : vector<2x64xf32>
    %182 = math.exp %181 : vector<2x64xf32>
    %cst_34 = arith.constant 1.000000e+00 : f32
    %183 = vector.broadcast %cst_34 : f32 to vector<2x64xf32>
    %184 = arith.addf %183, %182 : vector<2x64xf32>
    %185 = arith.divf %183, %184 : vector<2x64xf32>
    %186 = vector.extract_strided_slice %179 {offsets = [0, 64], sizes = [2, 64], strides = [1, 1]} : vector<2x256xf32> to vector<2x64xf32>
    %187 = arith.negf %186 : vector<2x64xf32>
    %188 = math.exp %187 : vector<2x64xf32>
    %cst_35 = arith.constant 1.000000e+00 : f32
    %189 = vector.broadcast %cst_35 : f32 to vector<2x64xf32>
    %190 = arith.addf %189, %188 : vector<2x64xf32>
    %191 = arith.divf %189, %190 : vector<2x64xf32>
    %192 = vector.extract_strided_slice %179 {offsets = [0, 128], sizes = [2, 64], strides = [1, 1]} : vector<2x256xf32> to vector<2x64xf32>
    %193 = math.tanh %192 : vector<2x64xf32>
    %194 = vector.extract_strided_slice %179 {offsets = [0, 192], sizes = [2, 64], strides = [1, 1]} : vector<2x256xf32> to vector<2x64xf32>
    %195 = arith.negf %194 : vector<2x64xf32>
    %196 = math.exp %195 : vector<2x64xf32>
    %cst_36 = arith.constant 1.000000e+00 : f32
    %197 = vector.broadcast %cst_36 : f32 to vector<2x64xf32>
    %198 = arith.addf %197, %196 : vector<2x64xf32>
    %199 = arith.divf %197, %198 : vector<2x64xf32>
    %200 = arith.mulf %191, %174 : vector<2x64xf32>
    %201 = arith.mulf %185, %193 : vector<2x64xf32>
    %202 = arith.addf %200, %201 : vector<2x64xf32>
    %203 = math.tanh %202 : vector<2x64xf32>
    %204 = arith.mulf %199, %203 : vector<2x64xf32>
    %205 = vector.extract_strided_slice %5 {offsets = [14, 0], sizes = [2, 256], strides = [1, 1]} : vector<16x256xf32> to vector<2x256xf32>
    %cst_37 = arith.constant dense<0.000000e+00> : vector<2x256xf32>
    %206 = tpu.matmul %204, %6, %cst_37 {dimension_numbers = #tpu.dot_dimension_numbers<[1], [0], [0], [1], [0, 0, 1, 1], [], []>} : vector<2x64xf32>, vector<64x256xf32>, vector<2x256xf32> -> vector<2x256xf32>
    %207 = arith.addf %205, %206 : vector<2x256xf32>
    %208 = vector.extract_strided_slice %207 {offsets = [0, 0], sizes = [2, 64], strides = [1, 1]} : vector<2x256xf32> to vector<2x64xf32>
    %209 = arith.negf %208 : vector<2x64xf32>
    %210 = math.exp %209 : vector<2x64xf32>
    %cst_38 = arith.constant 1.000000e+00 : f32
    %211 = vector.broadcast %cst_38 : f32 to vector<2x64xf32>
    %212 = arith.addf %211, %210 : vector<2x64xf32>
    %213 = arith.divf %211, %212 : vector<2x64xf32>
    %214 = vector.extract_strided_slice %207 {offsets = [0, 64], sizes = [2, 64], strides = [1, 1]} : vector<2x256xf32> to vector<2x64xf32>
    %215 = arith.negf %214 : vector<2x64xf32>
    %216 = math.exp %215 : vector<2x64xf32>
    %cst_39 = arith.constant 1.000000e+00 : f32
    %217 = vector.broadcast %cst_39 : f32 to vector<2x64xf32>
    %218 = arith.addf %217, %216 : vector<2x64xf32>
    %219 = arith.divf %217, %218 : vector<2x64xf32>
    %220 = vector.extract_strided_slice %207 {offsets = [0, 128], sizes = [2, 64], strides = [1, 1]} : vector<2x256xf32> to vector<2x64xf32>
    %221 = math.tanh %220 : vector<2x64xf32>
    %222 = vector.extract_strided_slice %207 {offsets = [0, 192], sizes = [2, 64], strides = [1, 1]} : vector<2x256xf32> to vector<2x64xf32>
    %223 = arith.negf %222 : vector<2x64xf32>
    %224 = math.exp %223 : vector<2x64xf32>
    %cst_40 = arith.constant 1.000000e+00 : f32
    %225 = vector.broadcast %cst_40 : f32 to vector<2x64xf32>
    %226 = arith.addf %225, %224 : vector<2x64xf32>
    %227 = arith.divf %225, %226 : vector<2x64xf32>
    %228 = arith.mulf %219, %202 : vector<2x64xf32>
    %229 = arith.mulf %213, %221 : vector<2x64xf32>
    %230 = arith.addf %228, %229 : vector<2x64xf32>
    %231 = math.tanh %230 : vector<2x64xf32>
    %232 = arith.mulf %227, %231 : vector<2x64xf32>
    %233 = vector.shape_cast %36 : vector<2x64xf32> to vector<2x1x64xf32>
    %234 = vector.shape_cast %64 : vector<2x64xf32> to vector<2x1x64xf32>
    %235 = vector.shape_cast %92 : vector<2x64xf32> to vector<2x1x64xf32>
    %236 = vector.shape_cast %120 : vector<2x64xf32> to vector<2x1x64xf32>
    %237 = vector.shape_cast %148 : vector<2x64xf32> to vector<2x1x64xf32>
    %238 = vector.shape_cast %176 : vector<2x64xf32> to vector<2x1x64xf32>
    %239 = vector.shape_cast %204 : vector<2x64xf32> to vector<2x1x64xf32>
    %240 = vector.shape_cast %232 : vector<2x64xf32> to vector<2x1x64xf32>
    %241 = tpu.concatenate %233, %234, %235, %236, %237, %238, %239, %240 in 1 : vector<2x1x64xf32>, vector<2x1x64xf32>, vector<2x1x64xf32>, vector<2x1x64xf32>, vector<2x1x64xf32>, vector<2x1x64xf32>, vector<2x1x64xf32>, vector<2x1x64xf32> -> vector<2x8x64xf32>
    %242 = vector.extract_strided_slice %241 {offsets = [0, 0, 0], sizes = [2, 8, 32], strides = [1, 1, 1]} : vector<2x8x64xf32> to vector<2x8x32xf32>
    %243 = vector.shape_cast %232 : vector<2x64xf32> to vector<2x1x64xf32>
    %244 = vector.shape_cast %204 : vector<2x64xf32> to vector<2x1x64xf32>
    %245 = vector.shape_cast %176 : vector<2x64xf32> to vector<2x1x64xf32>
    %246 = vector.shape_cast %148 : vector<2x64xf32> to vector<2x1x64xf32>
    %247 = vector.shape_cast %120 : vector<2x64xf32> to vector<2x1x64xf32>
    %248 = vector.shape_cast %92 : vector<2x64xf32> to vector<2x1x64xf32>
    %249 = vector.shape_cast %64 : vector<2x64xf32> to vector<2x1x64xf32>
    %250 = vector.shape_cast %36 : vector<2x64xf32> to vector<2x1x64xf32>
    %251 = tpu.concatenate %243, %244, %245, %246, %247, %248, %249, %250 in 1 : vector<2x1x64xf32>, vector<2x1x64xf32>, vector<2x1x64xf32>, vector<2x1x64xf32>, vector<2x1x64xf32>, vector<2x1x64xf32>, vector<2x1x64xf32>, vector<2x1x64xf32> -> vector<2x8x64xf32>
    %252 = vector.extract_strided_slice %251 {offsets = [0, 0, 32], sizes = [2, 8, 32], strides = [1, 1, 1]} : vector<2x8x64xf32> to vector<2x8x32xf32>
    %253 = tpu.concatenate %242, %252 in 2 : vector<2x8x32xf32>, vector<2x8x32xf32> -> vector<2x8x64xf32>
    %254 = vector.shape_cast %253 : vector<2x8x64xf32> to vector<16x64xf32>
    %255 = arith.truncf %254 : vector<16x64xf32> to vector<16x64xbf16>
    %c0_41 = arith.constant 0 : index
    %c0_42 = arith.constant 0 : index
    %256 = vector.load %arg4[%c0_41, %c0_42] : memref<64x384xbf16, #tpu.memory_space<vmem>>, vector<64x384xbf16>
    %cst_43 = arith.constant dense<0.000000e+00> : vector<16x384xf32>
    %257 = tpu.matmul %255, %256, %cst_43 {dimension_numbers = #tpu.dot_dimension_numbers<[1], [0], [0], [1], [0, 0, 1, 1], [], []>} : vector<16x64xbf16>, vector<64x384xbf16>, vector<16x384xf32> -> vector<16x384xf32>
    %258 = arith.truncf %257 : vector<16x384xf32> to vector<16x384xbf16>
    %c0_44 = arith.constant 0 : index
    %c0_45 = arith.constant 0 : index
    %259 = vector.load %arg5[%c0_44, %c0_45] : memref<384x384xbf16, #tpu.memory_space<vmem>>, vector<384x384xbf16>
    %cst_46 = arith.constant dense<0.000000e+00> : vector<16x384xf32>
    %260 = tpu.matmul %258, %259, %cst_46 {dimension_numbers = #tpu.dot_dimension_numbers<[1], [0], [0], [1], [0, 0, 1, 1], [], []>} : vector<16x384xbf16>, vector<384x384xbf16>, vector<16x384xf32> -> vector<16x384xf32>
    %261 = arith.mulf %260, %257 : vector<16x384xf32>
    %262 = arith.addf %261, %260 : vector<16x384xf32>
    %263 = arith.truncf %262 : vector<16x384xf32> to vector<16x384xbf16>
    %c0_47 = arith.constant 0 : index
    %c0_48 = arith.constant 0 : index
    %264 = vector.load %arg6[%c0_47, %c0_48] : memref<384x30xbf16, #tpu.memory_space<vmem>>, vector<384x30xbf16>
    %cst_49 = arith.constant dense<0.000000e+00> : vector<16x30xf32>
    %265 = tpu.matmul %263, %264, %cst_49 {dimension_numbers = #tpu.dot_dimension_numbers<[1], [0], [0], [1], [0, 0, 1, 1], [], []>} : vector<16x384xbf16>, vector<384x30xbf16>, vector<16x30xf32> -> vector<16x30xf32>
    %266 = vector.shape_cast %265 : vector<16x30xf32> to vector<2x8x30xf32>
    %cst_50 = arith.constant dense<0xFF800000> : vector<2x30xf32>
    %267 = vector.multi_reduction <maximumf>, %266, %cst_50 [1] : vector<2x8x30xf32> to vector<2x30xf32>
    %268 = vector.shape_cast %267 : vector<2x30xf32> to vector<2x1x30xf32>
    %269 = vector.broadcast %268 : vector<2x1x30xf32> to vector<2x8x30xf32>
    %270 = arith.subf %266, %269 : vector<2x8x30xf32>
    %271 = math.exp %270 : vector<2x8x30xf32>
    %cst_51 = arith.constant dense<0.000000e+00> : vector<2x30xf32>
    %272 = vector.multi_reduction <add>, %271, %cst_51 [1] : vector<2x8x30xf32> to vector<2x30xf32>
    %273 = vector.shape_cast %272 : vector<2x30xf32> to vector<2x1x30xf32>
    %274 = tpu.reciprocal %273 : vector<2x1x30xf32> -> vector<2x1x30xf32>
    %275 = vector.broadcast %274 : vector<2x1x30xf32> to vector<2x8x30xf32>
    %276 = arith.mulf %271, %275 : vector<2x8x30xf32>
    %277 = vector.shape_cast %276 : vector<2x8x30xf32> to vector<16x30xf32>
    %c0_52 = arith.constant 0 : index
    %c0_53 = arith.constant 0 : index
    %278 = vector.load %arg7[%c0_52, %c0_53] : memref<64x120xbf16, #tpu.memory_space<vmem>>, vector<64x120xbf16>
    %cst_54 = arith.constant dense<0.000000e+00> : vector<16x120xf32>
    %279 = tpu.matmul %255, %278, %cst_54 {dimension_numbers = #tpu.dot_dimension_numbers<[1], [0], [0], [1], [0, 0, 1, 1], [], []>} : vector<16x64xbf16>, vector<64x120xbf16>, vector<16x120xf32> -> vector<16x120xf32>
    %c0_55 = arith.constant 0 : index
    %c0_56 = arith.constant 0 : index
    %280 = vector.load %arg8[%c0_55, %c0_56] : memref<30x120xf32, #tpu.memory_space<vmem>>, vector<30x120xf32>
    %cst_57 = arith.constant dense<0.000000e+00> : vector<16x120xf32>
    %281 = tpu.matmul %277, %280, %cst_57 {dimension_numbers = #tpu.dot_dimension_numbers<[1], [0], [0], [1], [0, 0, 1, 1], [], []>} : vector<16x30xf32>, vector<30x120xf32>, vector<16x120xf32> -> vector<16x120xf32>
    %282 = arith.mulf %281, %279 : vector<16x120xf32>
    %c0_58 = arith.constant 0 : index
    %c0_59 = arith.constant 0 : index
    %283 = vector.load %arg9[%c0_58, %c0_59] : memref<120x4xf32, #tpu.memory_space<vmem>>, vector<120x4xf32>
    %cst_60 = arith.constant dense<0.000000e+00> : vector<16x4xf32>
    %284 = tpu.matmul %282, %283, %cst_60 {dimension_numbers = #tpu.dot_dimension_numbers<[1], [0], [0], [1], [0, 0, 1, 1], [], []>} : vector<16x120xf32>, vector<120x4xf32>, vector<16x4xf32> -> vector<16x4xf32>
    %285 = vector.shape_cast %284 : vector<16x4xf32> to vector<2x8x4xf32>
    %cst_61 = arith.constant dense<0.000000e+00> : vector<2x4xf32>
    %286 = vector.multi_reduction <add>, %285, %cst_61 [1] : vector<2x8x4xf32> to vector<2x4xf32>
    %c0_62 = arith.constant 0 : index
    %c0_63 = arith.constant 0 : index
    %287 = vector.load %arg10[%c0_62, %c0_63] : memref<2x4xf32, #tpu.memory_space<vmem>>, vector<2x4xf32>
    tpu.vector_store %arg10[%c0_62, %c0_63], %286 {strides = array<i32>} : memref<2x4xf32, #tpu.memory_space<vmem>>, vector<2x4xf32>,
    return
  }
}

</mosaic_0001>

<llo_original>
// kernel: self_dd_attn_forward.1
$region0: #{self_dd_attn_forward.1}
  #allocation0 [shape = 'u32[]', space=smem, size = 0x4, offset = 0x4, fixed_abs, tag = 'smem constant byte address 0x4 - core index']
  #allocation1 [shape = 'u32[144,128]{1,0:T(1,128)}', space=vmem, size = 0x12000, scoped, tag = 'internal scratch']
  %s0 = inlined_call_operand.vmem [shape: f32[16,64], index: 0, kind: input, shape index: {}]
  %s1 = inlined_call_operand.vmem [shape: f32[64,256], index: 1, kind: input, shape index: {}]
  %s2 = inlined_call_operand.vmem [shape: f32[64,256], index: 2, kind: input, shape index: {}]
  %s3 = inlined_call_operand.vmem [shape: f32[1,256], index: 3, kind: input, shape index: {}]
  %s4 = inlined_call_operand.vmem [shape: bf16[64,384], index: 4, kind: input, shape index: {}]
  %s5 = inlined_call_operand.hbm [shape: bf16[384,384], index: 5, kind: input, shape index: {}]
  %s6 = inlined_call_operand.vmem [shape: bf16[384,30], index: 6, kind: input, shape index: {}]
  %s7 = inlined_call_operand.vmem [shape: bf16[64,120], index: 7, kind: input, shape index: {}]
  %s8 = inlined_call_operand.vmem [shape: f32[30,120], index: 8, kind: input, shape index: {}]
  %s9 = inlined_call_operand.vmem [shape: f32[120,4], index: 9, kind: input, shape index: {}]
  %s10 = inlined_call_operand.hbm [shape: f32[2,4], index: 10, kind: output, shape index: {}]
  %s11 = sld [smem:[#allocation0]]
  $region54: #{self_dd_attn_forward.1} parent=0
    _
  %s13 = ssub.s32 1, %s11
  %s14 = scalar_select 0, %s13, %s11
  $region1: #{self_dd_attn_forward.1} parent=0
    #allocation2 [shape = 'u8[294912]{0}', space=vmem, size = 0x48000, scoped, tag = 'input window, operand 5, single buffered']
    #allocation3 [shape = 's32[1]{0}', space=sflag, size = 0x4, scoped, tag = 'scoped memory for self_dd_attn_forward.1']
    #allocation4 [shape = 's32[1]{0}', space=sflag, size = 0x4, scoped, tag = 'scoped memory for self_dd_attn_forward.1']
    #allocation5 [shape = 'u8[1024]{0}', space=vmem, size = 0x400, scoped, tag = 'output window, operand 0, single buffered']
    %15 = vsyncpa [#allocation3], 0
    %16 = vsyncpa [#allocation4], 0
    // Predicated region
    $region2: #{self_dd_attn_forward.1} parent=1 // pred_check
      _
    $region3: #{self_dd_attn_forward.1} parent=1 // pred_check_branch
      %18 = sbr.rel (0) target = $region5
    $region4: #{self_dd_attn_forward.1} parent=1 // pred_region
      _
    $region5: #{self_dd_attn_forward.1} parent=1 // pred_fallthru
      _
    // Predicated region
    $region6: #{self_dd_attn_forward.1} parent=1 // pred_check
      _
    $region7: #{self_dd_attn_forward.1} parent=1 // pred_check_branch
      %20 = sbr.rel (0) target = $region9
    $region8: #{self_dd_attn_forward.1} parent=1 // pred_region
      _
    $region9: #{self_dd_attn_forward.1} parent=1 // pred_fallthru
      _
    // Predicated region
    $region10: #{self_dd_attn_forward.1} parent=1 // pred_check
      _
    $region11: #{self_dd_attn_forward.1} parent=1 // pred_check_branch
      %22 = sbr.rel (0) target = $region13
    $region12: #{self_dd_attn_forward.1} parent=1 // pred_region
      _
    $region13: #{self_dd_attn_forward.1} parent=1 // pred_fallthru
      _
    // Predicated region
    $region14: #{self_dd_attn_forward.1} parent=1 // pred_check
      _
    $region15: #{self_dd_attn_forward.1} parent=1 // pred_check_branch
      %24 = sbr.rel (0) target = $region17
    $region16: #{self_dd_attn_forward.1} parent=1 // pred_region
      _
    $region17: #{self_dd_attn_forward.1} parent=1 // pred_fallthru
      _
    // Predicated region
    $region18: #{self_dd_attn_forward.1} parent=1 // pred_check
      _
    $region19: #{self_dd_attn_forward.1} parent=1 // pred_check_branch
      %26 = sbr.rel (0) target = $region21
    $region20: #{self_dd_attn_forward.1} parent=1 // pred_region
      _
    $region21: #{self_dd_attn_forward.1} parent=1 // pred_fallthru
      _
    // Predicated region
    $region22: #{self_dd_attn_forward.1} parent=1 // pred_check
      _
    $region23: #{self_dd_attn_forward.1} parent=1 // pred_check_branch
      %28 = sbr.rel (0) target = $region25
    $region24: #{self_dd_attn_forward.1} parent=1 // pred_region
      %s30 = ssub.s32 9216, 9216
      %31 = vsyncadd [#allocation3], %s30
      %s32 = sshll.u32 [#allocation2], 4
      %s33 = int_to_ptr.vmem [resolvable:$true] %s32
      %38 = dma.hbm_to_vmem [thread:$0]  %s5, 9216, %s33, [#allocation3], 192, 192, 12
    $region25: #{self_dd_attn_forward.1} parent=1 // pred_fallthru
      _
    // Predicated region
    $region26: #{self_dd_attn_forward.1} parent=1 // pred_check
      _
    $region27: #{self_dd_attn_forward.1} parent=1 // pred_check_branch
      %40 = sbr.rel (0) target = $region29
    $region28: #{self_dd_attn_forward.1} parent=1 // pred_region
      _
    $region29: #{self_dd_attn_forward.1} parent=1 // pred_fallthru
      _
    // Predicated region
    $region30: #{self_dd_attn_forward.1} parent=1 // pred_check
      _
    $region31: #{self_dd_attn_forward.1} parent=1 // pred_check_branch
      %42 = sbr.rel (0) target = $region33
    $region32: #{self_dd_attn_forward.1} parent=1 // pred_region
      _
    $region33: #{self_dd_attn_forward.1} parent=1 // pred_fallthru
      _
    // Predicated region
    $region34: #{self_dd_attn_forward.1} parent=1 // pred_check
      _
    $region35: #{self_dd_attn_forward.1} parent=1 // pred_check_branch
      %44 = sbr.rel (0) target = $region37
    $region36: #{self_dd_attn_forward.1} parent=1 // pred_region
      _
    $region37: #{self_dd_attn_forward.1} parent=1 // pred_fallthru
      _
    // Predicated region
    $region38: #{self_dd_attn_forward.1} parent=1 // pred_check
      _
    $region39: #{self_dd_attn_forward.1} parent=1 // pred_check_branch
      %46 = sbr.rel (0) target = $region41
    $region40: #{self_dd_attn_forward.1} parent=1 // pred_region
      _
    $region41: #{self_dd_attn_forward.1} parent=1 // pred_fallthru
      _
    // Predicated region
    $region42: #{self_dd_attn_forward.1} parent=1 // pred_check
      _
    $region43: #{self_dd_attn_forward.1} parent=1 // pred_check_branch
      %48 = sbr.rel (0) target = $region45
    $region44: #{self_dd_attn_forward.1} parent=1 // pred_region
      %49 = dma.done [#allocation3], 9216
    $region45: #{self_dd_attn_forward.1} parent=1 // pred_fallthru
      _
    %v51 = vld [vmem:[%s0] sm:$0xff]
    %v52 = vld [vmem:[%s0 + $0x8] sm:$0xff]
    %v53 = vld [vmem:[%s1] sm:$0xff]
    %v54 = vld [vmem:[%s1 + $0x8] sm:$0xff]
    %v55 = vld [vmem:[%s1 + $0x10] sm:$0xff]
    %v56 = vld [vmem:[%s1 + $0x18] sm:$0xff]
    %v57 = vld [vmem:[%s1 + $0x20] sm:$0xff]
    %v58 = vld [vmem:[%s1 + $0x28] sm:$0xff]
    %v59 = vld [vmem:[%s1 + $0x30] sm:$0xff]
    %v60 = vld [vmem:[%s1 + $0x38] sm:$0xff]
    %v61 = vld [vmem:[%s1 + $0x40] sm:$0xff]
    %v62 = vld [vmem:[%s1 + $0x48] sm:$0xff]
    %v63 = vld [vmem:[%s1 + $0x50] sm:$0xff]
    %v64 = vld [vmem:[%s1 + $0x58] sm:$0xff]
    %v65 = vld [vmem:[%s1 + $0x60] sm:$0xff]
    %v66 = vld [vmem:[%s1 + $0x68] sm:$0xff]
    %v67 = vld [vmem:[%s1 + $0x70] sm:$0xff]
    %v68 = vld [vmem:[%s1 + $0x78] sm:$0xff]
    %v69 = vld [vmem:[%s3] sm:$0x3]
    %v71 = vlaneseq
    %v72 = vshrl.u32 %v71, 7
    %v73 = vsub.s32 0, %v72
    %v74 = vrot.slane %v69, %v73
    %v75 = vlaneseq
    %v76 = vshrl.u32 %v75, 7
    %v77 = vsub.s32 1, %v76
    %v78 = vrot.slane %v69, %v77
    %vm81 = vcmask 523264
    %v83 = vsel %vm81, %v51, 0
    %v86 = vsel %vm81, %v52, 0
    %88 = vmatprep.subr.mxu0 %v54
    %89 = vmatpush1.msra.mxu0 %v53
    %90 = vmatprep.subr.mxu0 %v56
    %91 = vmatpush1.msra.mxu0 %v55
    %92 = vmatprep.subr.mxu0 %v58
    %93 = vmatpush1.msra.mxu0 %v57
    %94 = vmatprep.subr.mxu0 %v60
    %95 = vmatpush1.msra.mxu0 %v59
    %96 = vmatprep.subr.mxu0 %v62
    %97 = vmatpush1.msra.mxu0 %v61
    %98 = vmatprep.subr.mxu0 %v64
    %99 = vmatpush1.msra.mxu0 %v63
    %100 = vmatprep.subr.mxu0 %v66
    %101 = vmatpush1.msra.mxu0 %v65
    %102 = vmatprep.subr.mxu0 %v68
    %103 = vmatpush1.msra.mxu0 %v67
    %104 = vmatprep.subr.mxu0 0.0
    %105 = vmatpush1.msra.mxu0 0.0
    %106 = vmatprep.subr.mxu0 0.0
    %107 = vmatpush1.msra.mxu0 0.0
    %108 = vmatprep.subr.mxu0 0.0
    %109 = vmatpush1.msra.mxu0 0.0
    %110 = vmatprep.subr.mxu0 0.0
    %111 = vmatpush1.msra.mxu0 0.0
    %112 = vmatprep.subr.mxu0 0.0
    %113 = vmatpush1.msra.mxu0 0.0
    %114 = vmatprep.subr.mxu0 0.0
    %115 = vmatpush1.msra.mxu0 0.0
    %116 = vmatprep.subr.mxu0 0.0
    %117 = vmatpush1.msra.mxu0 0.0
    %118 = vmatprep.subr.mxu0 0.0
    %119 = vmatpush1.msra.mxu0 0.0
    %120 = vmatprep.subr.mxu0 0.0
    %121 = vmatpush1.msra.mxu0 0.0
    %122 = vmatprep.subr.mxu0 0.0
    %123 = vmatpush1.msra.mxu0 0.0
    %124 = vmatprep.subr.mxu0 0.0
    %125 = vmatpush1.msra.mxu0 0.0
    %126 = vmatprep.subr.mxu0 0.0
    %127 = vmatpush1.msra.mxu0 0.0
    %128 = vmatprep.subr.mxu0 0.0
    %129 = vmatpush1.msra.mxu0 0.0
    %130 = vmatprep.subr.mxu0 0.0
    %131 = vmatpush1.msra.mxu0 0.0
    %132 = vmatprep.subr.mxu0 0.0
    %133 = vmatpush1.msra.mxu0 0.0
    %134 = vmatprep.subr.mxu0 0.0
    %135 = vmatpush1.msra.mxu0 0.0
    %136 = vmatprep.subr.mxu0 0.0
    %137 = vmatpush1.msra.mxu0 0.0
    %138 = vmatprep.subr.mxu0 0.0
    %139 = vmatpush1.msra.mxu0 0.0
    %140 = vmatprep.subr.mxu0 0.0
    %141 = vmatpush1.msra.mxu0 0.0
    %142 = vmatprep.subr.mxu0 0.0
    %143 = vmatpush1.msra.mxu0 0.0
    %144 = vmatprep.subr.mxu0 0.0
    %145 = vmatpush1.msra.mxu0 0.0
    %146 = vmatprep.subr.mxu0 0.0
    %147 = vmatpush1.msra.mxu0 0.0
    %148 = vmatprep.subr.mxu0 0.0
    %149 = vmatpush1.msra.mxu0 0.0
    %150 = vmatprep.subr.mxu0 0.0
    %151 = vmatpush1.msra.mxu0 0.0
    %152 = vmatprep.mubr.f32.mxu0 0.0
    %153 = vmatmul.mubr.f32.gmra.mrb[0].mxu0 %v83
    %v154 = vpop.f32.mrb[0].mxu0
    %v155 = vadd.f32 %v74, %v154
    %v156 = vpop.f32.mrb[0].mxu0
    %v157 = vadd.f32 %v78, %v156
    %158 = vmatprep.mubr.f32.mxu0 0.0
    %159 = vmatmul.mubr.f32.gmra.mrb[0].mxu0 %v86
    %v160 = vpop.f32.mrb[0].mxu0
    %v161 = vadd.f32 %v74, %v160
    %v162 = vpop.f32.mrb[0].mxu0
    %v163 = vadd.f32 %v78, %v162
    %164 = vdwg.mxu0
    %v165 = vld [vmem:[%s2] sm:$0xff]
    %v166 = vld [vmem:[%s2 + $0x8] sm:$0xff]
    %v167 = vld [vmem:[%s2 + $0x10] sm:$0xff]
    %v168 = vld [vmem:[%s2 + $0x18] sm:$0xff]
    %v169 = vld [vmem:[%s2 + $0x20] sm:$0xff]
    %v170 = vld [vmem:[%s2 + $0x28] sm:$0xff]
    %v171 = vld [vmem:[%s2 + $0x30] sm:$0xff]
    %v172 = vld [vmem:[%s2 + $0x38] sm:$0xff]
    %v173 = vld [vmem:[%s2 + $0x40] sm:$0xff]
    %v174 = vld [vmem:[%s2 + $0x48] sm:$0xff]
    %v175 = vld [vmem:[%s2 + $0x50] sm:$0xff]
    %v176 = vld [vmem:[%s2 + $0x58] sm:$0xff]
    %v177 = vld [vmem:[%s2 + $0x60] sm:$0xff]
    %v178 = vld [vmem:[%s2 + $0x68] sm:$0xff]
    %v179 = vld [vmem:[%s2 + $0x70] sm:$0xff]
    %v180 = vld [vmem:[%s2 + $0x78] sm:$0xff]
    %v182 = vsel %vm81, 0.0, 0
    %184 = vmatprep.subr.mxu0 %v166
    %185 = vmatpush1.msra.mxu0 %v165
    %186 = vmatprep.subr.mxu0 %v168
    %187 = vmatpush1.msra.mxu0 %v167
    %188 = vmatprep.subr.mxu0 %v170
    %189 = vmatpush1.msra.mxu0 %v169
    %190 = vmatprep.subr.mxu0 %v172
    %191 = vmatpush1.msra.mxu0 %v171
    %192 = vmatprep.subr.mxu0 %v174
    %193 = vmatpush1.msra.mxu0 %v173
    %194 = vmatprep.subr.mxu0 %v176
    %195 = vmatpush1.msra.mxu0 %v175
    %196 = vmatprep.subr.mxu0 %v178
    %197 = vmatpush1.msra.mxu0 %v177
    %198 = vmatprep.subr.mxu0 %v180
    %199 = vmatpush1.msra.mxu0 %v179
    %200 = vmatprep.subr.mxu0 0.0
    %201 = vmatpush1.msra.mxu0 0.0
    %202 = vmatprep.subr.mxu0 0.0
    %203 = vmatpush1.msra.mxu0 0.0
    %204 = vmatprep.subr.mxu0 0.0
    %205 = vmatpush1.msra.mxu0 0.0
    %206 = vmatprep.subr.mxu0 0.0
    %207 = vmatpush1.msra.mxu0 0.0
    %208 = vmatprep.subr.mxu0 0.0
    %209 = vmatpush1.msra.mxu0 0.0
    %210 = vmatprep.subr.mxu0 0.0
    %211 = vmatpush1.msra.mxu0 0.0
    %212 = vmatprep.subr.mxu0 0.0
    %213 = vmatpush1.msra.mxu0 0.0
    %214 = vmatprep.subr.mxu0 0.0
    %215 = vmatpush1.msra.mxu0 0.0
    %216 = vmatprep.subr.mxu0 0.0
    %217 = vmatpush1.msra.mxu0 0.0
    %218 = vmatprep.subr.mxu0 0.0
    %219 = vmatpush1.msra.mxu0 0.0
    %220 = vmatprep.subr.mxu0 0.0
    %221 = vmatpush1.msra.mxu0 0.0
    %222 = vmatprep.subr.mxu0 0.0
    %223 = vmatpush1.msra.mxu0 0.0
    %224 = vmatprep.subr.mxu0 0.0
    %225 = vmatpush1.msra.mxu0 0.0
    %226 = vmatprep.subr.mxu0 0.0
    %227 = vmatpush1.msra.mxu0 0.0
    %228 = vmatprep.subr.mxu0 0.0
    %229 = vmatpush1.msra.mxu0 0.0
    %230 = vmatprep.subr.mxu0 0.0
    %231 = vmatpush1.msra.mxu0 0.0
    %232 = vmatprep.subr.mxu0 0.0
    %233 = vmatpush1.msra.mxu0 0.0
    %234 = vmatprep.subr.mxu0 0.0
    %235 = vmatpush1.msra.mxu0 0.0
    %236 = vmatprep.subr.mxu0 0.0
    %237 = vmatpush1.msra.mxu0 0.0
    %238 = vmatprep.subr.mxu0 0.0
    %239 = vmatpush1.msra.mxu0 0.0
    %240 = vmatprep.subr.mxu0 0.0
    %241 = vmatpush1.msra.mxu0 0.0
    %242 = vmatprep.subr.mxu0 0.0
    %243 = vmatpush1.msra.mxu0 0.0
    %244 = vmatprep.subr.mxu0 0.0
    %245 = vmatpush1.msra.mxu0 0.0
    %246 = vmatprep.subr.mxu0 0.0
    %247 = vmatpush1.msra.mxu0 0.0
    %248 = vmatprep.mubr.f32.mxu0 0.0
    %249 = vmatmul.mubr.f32.gmra.mrb[0].mxu0 %v182
    %v250 = vpop.f32.mrb[0].mxu0
    %v251 = vadd.f32 0.0, %v250
    %v252 = vpop.f32.mrb[0].mxu0
    %v253 = vadd.f32 0.0, %v252
    %254 = vdwg.mxu0
    %v255 = vadd.f32 %v155, %v251
    %v256 = vadd.f32 %v157, %v253
    %v257 = vxor.u32 %v255, 2147483648
    %v258 = vmul.f32 %v257, 1.442695
    %v259 = vpow.pop %v258
    %v260 = vadd.f32 %v259, 1.0
    %v261 = vrcp.pop %v260
    %v262 = vmul.f32 1.0, %v261
    %v263 = vtanh.pop %v256
    %v264 = vxor.u32 %v256, 2147483648
    %v265 = vmul.f32 %v264, 1.442695
    %v266 = vpow.pop %v265
    %v267 = vadd.f32 %v266, 1.0
    %v268 = vrcp.pop %v267
    %v269 = vmul.f32 1.0, %v268
    %v270 = vmul.f32 %v262, 0.0
    %v271 = vmul.f32 %v262, %v263
    %273 = vrot.lane.b32.xlu0 %v271, 64
    %v274 = vpop.permute.xlu0 %273
    %v276 = vadd.f32 %v270, %v274
    %v277 = vtanh.pop %v276
    %v278 = vmul.f32 %v269, %v277
    %280 = vrot.lane.b32.xlu0 %v278, 64
    %v281 = vpop.permute.xlu0 %280
    %v282 = vsel %vm81, %v281, 0
    %284 = vmatprep.subr.mxu0 %v166
    %285 = vmatpush1.msra.mxu0 %v165
    %286 = vmatprep.subr.mxu0 %v168
    %287 = vmatpush1.msra.mxu0 %v167
    %288 = vmatprep.subr.mxu0 %v170
    %289 = vmatpush1.msra.mxu0 %v169
    %290 = vmatprep.subr.mxu0 %v172
    %291 = vmatpush1.msra.mxu0 %v171
    %292 = vmatprep.subr.mxu0 %v174
    %293 = vmatpush1.msra.mxu0 %v173
    %294 = vmatprep.subr.mxu0 %v176
    %295 = vmatpush1.msra.mxu0 %v175
    %296 = vmatprep.subr.mxu0 %v178
    %297 = vmatpush1.msra.mxu0 %v177
    %298 = vmatprep.subr.mxu0 %v180
    %299 = vmatpush1.msra.mxu0 %v179
    %300 = vmatprep.subr.mxu0 0.0
    %301 = vmatpush1.msra.mxu0 0.0
    %302 = vmatprep.subr.mxu0 0.0
    %303 = vmatpush1.msra.mxu0 0.0
    %304 = vmatprep.subr.mxu0 0.0
    %305 = vmatpush1.msra.mxu0 0.0
    %306 = vmatprep.subr.mxu0 0.0
    %307 = vmatpush1.msra.mxu0 0.0
    %308 = vmatprep.subr.mxu0 0.0
    %309 = vmatpush1.msra.mxu0 0.0
    %310 = vmatprep.subr.mxu0 0.0
    %311 = vmatpush1.msra.mxu0 0.0
    %312 = vmatprep.subr.mxu0 0.0
    %313 = vmatpush1.msra.mxu0 0.0
    %314 = vmatprep.subr.mxu0 0.0
    %315 = vmatpush1.msra.mxu0 0.0
    %316 = vmatprep.subr.mxu0 0.0
    %317 = vmatpush1.msra.mxu0 0.0
    %318 = vmatprep.subr.mxu0 0.0
    %319 = vmatpush1.msra.mxu0 0.0
    %320 = vmatprep.subr.mxu0 0.0
    %321 = vmatpush1.msra.mxu0 0.0
    %322 = vmatprep.subr.mxu0 0.0
    %323 = vmatpush1.msra.mxu0 0.0
    %324 = vmatprep.subr.mxu0 0.0
    %325 = vmatpush1.msra.mxu0 0.0
    %326 = vmatprep.subr.mxu0 0.0
    %327 = vmatpush1.msra.mxu0 0.0
    %328 = vmatprep.subr.mxu0 0.0
    %329 = vmatpush1.msra.mxu0 0.0
    %330 = vmatprep.subr.mxu0 0.0
    %331 = vmatpush1.msra.mxu0 0.0
    %332 = vmatprep.subr.mxu0 0.0
    %333 = vmatpush1.msra.mxu0 0.0
    %334 = vmatprep.subr.mxu0 0.0
    %335 = vmatpush1.msra.mxu0 0.0
    %336 = vmatprep.subr.mxu0 0.0
    %337 = vmatpush1.msra.mxu0 0.0
    %338 = vmatprep.subr.mxu0 0.0
    %339 = vmatpush1.msra.mxu0 0.0
    %340 = vmatprep.subr.mxu0 0.0
    %341 = vmatpush1.msra.mxu0 0.0
    %342 = vmatprep.subr.mxu0 0.0
    %343 = vmatpush1.msra.mxu0 0.0
    %344 = vmatprep.subr.mxu0 0.0
    %345 = vmatpush1.msra.mxu0 0.0
    %346 = vmatprep.subr.mxu0 0.0
    %347 = vmatpush1.msra.mxu0 0.0
    %348 = vmatprep.mubr.f32.mxu0 0.0
    %349 = vmatmul.mubr.f32.gmra.mrb[0].mxu0 %v282
    %v350 = vpop.f32.mrb[0].mxu0
    %v351 = vadd.f32 0.0, %v350
    %v352 = vpop.f32.mrb[0].mxu0
    %v353 = vadd.f32 0.0, %v352
    %354 = vdwg.mxu0
    %v357 = vrot.slane %v351, 6
    %v358 = vrot.slane %v353, 6
    %v361 = vadd.f32 %v155, %v357
    %v362 = vadd.f32 %v157, %v358
    %v363 = vxor.u32 %v361, 2147483648
    %v364 = vmul.f32 %v363, 1.442695
    %v365 = vpow.pop %v364
    %v366 = vadd.f32 %v365, 1.0
    %v367 = vrcp.pop %v366
    %v368 = vmul.f32 1.0, %v367
    %v369 = vtanh.pop %v362
    %v370 = vxor.u32 %v362, 2147483648
    %v371 = vmul.f32 %v370, 1.442695
    %v372 = vpow.pop %v371
    %v373 = vadd.f32 %v372, 1.0
    %v374 = vrcp.pop %v373
    %v375 = vmul.f32 1.0, %v374
    %v377 = vrot.slane %v276, 6
    %v379 = vmul.f32 %v368, %v377
    %v380 = vmul.f32 %v368, %v369
    %382 = vrot.lane.b32.xlu0 %v380, 64
    %v383 = vpop.permute.xlu0 %382
    %v385 = vadd.f32 %v379, %v383
    %v386 = vtanh.pop %v385
    %v387 = vmul.f32 %v375, %v386
    %v389 = vrot.slane %v387, 2
    %390 = vrot.lane.b32.xlu0 %v389, 64
    %v391 = vpop.permute.xlu0 %390
    %v392 = vsel %vm81, %v391, 0
    %394 = vmatprep.subr.mxu0 %v166
    %395 = vmatpush1.msra.mxu0 %v165
    %396 = vmatprep.subr.mxu0 %v168
    %397 = vmatpush1.msra.mxu0 %v167
    %398 = vmatprep.subr.mxu0 %v170
    %399 = vmatpush1.msra.mxu0 %v169
    %400 = vmatprep.subr.mxu0 %v172
    %401 = vmatpush1.msra.mxu0 %v171
    %402 = vmatprep.subr.mxu0 %v174
    %403 = vmatpush1.msra.mxu0 %v173
    %404 = vmatprep.subr.mxu0 %v176
    %405 = vmatpush1.msra.mxu0 %v175
    %406 = vmatprep.subr.mxu0 %v178
    %407 = vmatpush1.msra.mxu0 %v177
    %408 = vmatprep.subr.mxu0 %v180
    %409 = vmatpush1.msra.mxu0 %v179
    %410 = vmatprep.subr.mxu0 0.0
    %411 = vmatpush1.msra.mxu0 0.0
    %412 = vmatprep.subr.mxu0 0.0
    %413 = vmatpush1.msra.mxu0 0.0
    %414 = vmatprep.subr.mxu0 0.0
    %415 = vmatpush1.msra.mxu0 0.0
    %416 = vmatprep.subr.mxu0 0.0
    %417 = vmatpush1.msra.mxu0 0.0
    %418 = vmatprep.subr.mxu0 0.0
    %419 = vmatpush1.msra.mxu0 0.0
    %420 = vmatprep.subr.mxu0 0.0
    %421 = vmatpush1.msra.mxu0 0.0
    %422 = vmatprep.subr.mxu0 0.0
    %423 = vmatpush1.msra.mxu0 0.0
    %424 = vmatprep.subr.mxu0 0.0
    %425 = vmatpush1.msra.mxu0 0.0
    %426 = vmatprep.subr.mxu0 0.0
    %427 = vmatpush1.msra.mxu0 0.0
    %428 = vmatprep.subr.mxu0 0.0
    %429 = vmatpush1.msra.mxu0 0.0
    %430 = vmatprep.subr.mxu0 0.0
    %431 = vmatpush1.msra.mxu0 0.0
    %432 = vmatprep.subr.mxu0 0.0
    %433 = vmatpush1.msra.mxu0 0.0
    %434 = vmatprep.subr.mxu0 0.0
    %435 = vmatpush1.msra.mxu0 0.0
    %436 = vmatprep.subr.mxu0 0.0
    %437 = vmatpush1.msra.mxu0 0.0
    %438 = vmatprep.subr.mxu0 0.0
    %439 = vmatpush1.msra.mxu0 0.0
    %440 = vmatprep.subr.mxu0 0.0
    %441 = vmatpush1.msra.mxu0 0.0
    %442 = vmatprep.subr.mxu0 0.0
    %443 = vmatpush1.msra.mxu0 0.0
    %444 = vmatprep.subr.mxu0 0.0
    %445 = vmatpush1.msra.mxu0 0.0
    %446 = vmatprep.subr.mxu0 0.0
    %447 = vmatpush1.msra.mxu0 0.0
    %448 = vmatprep.subr.mxu0 0.0
    %449 = vmatpush1.msra.mxu0 0.0
    %450 = vmatprep.subr.mxu0 0.0
    %451 = vmatpush1.msra.mxu0 0.0
    %452 = vmatprep.subr.mxu0 0.0
    %453 = vmatpush1.msra.mxu0 0.0
    %454 = vmatprep.subr.mxu0 0.0
    %455 = vmatpush1.msra.mxu0 0.0
    %456 = vmatprep.subr.mxu0 0.0
    %457 = vmatpush1.msra.mxu0 0.0
    %458 = vmatprep.mubr.f32.mxu0 0.0
    %459 = vmatmul.mubr.f32.gmra.mrb[0].mxu0 %v392
    %v460 = vpop.f32.mrb[0].mxu0
    %v461 = vadd.f32 0.0, %v460
    %v462 = vpop.f32.mrb[0].mxu0
    %v463 = vadd.f32 0.0, %v462
    %464 = vdwg.mxu0
    %v467 = vrot.slane %v461, 4
    %v468 = vrot.slane %v463, 4
    %v471 = vadd.f32 %v155, %v467
    %v472 = vadd.f32 %v157, %v468
    %v473 = vxor.u32 %v471, 2147483648
    %v474 = vmul.f32 %v473, 1.442695
    %v475 = vpow.pop %v474
    %v476 = vadd.f32 %v475, 1.0
    %v477 = vrcp.pop %v476
    %v478 = vmul.f32 1.0, %v477
    %v479 = vtanh.pop %v472
    %v480 = vxor.u32 %v472, 2147483648
    %v481 = vmul.f32 %v480, 1.442695
    %v482 = vpow.pop %v481
    %v483 = vadd.f32 %v482, 1.0
    %v484 = vrcp.pop %v483
    %v485 = vmul.f32 1.0, %v484
    %v487 = vrot.slane %v385, 6
    %v489 = vmul.f32 %v478, %v487
    %v490 = vmul.f32 %v478, %v479
    %492 = vrot.lane.b32.xlu0 %v490, 64
    %v493 = vpop.permute.xlu0 %492
    %v495 = vadd.f32 %v489, %v493
    %v496 = vtanh.pop %v495
    %v497 = vmul.f32 %v485, %v496
    %v499 = vrot.slane %v497, 4
    %500 = vrot.lane.b32.xlu0 %v499, 64
    %v501 = vpop.permute.xlu0 %500
    %v502 = vsel %vm81, %v501, 0
    %504 = vmatprep.subr.mxu0 %v166
    %505 = vmatpush1.msra.mxu0 %v165
    %506 = vmatprep.subr.mxu0 %v168
    %507 = vmatpush1.msra.mxu0 %v167
    %508 = vmatprep.subr.mxu0 %v170
    %509 = vmatpush1.msra.mxu0 %v169
    %510 = vmatprep.subr.mxu0 %v172
    %511 = vmatpush1.msra.mxu0 %v171
    %512 = vmatprep.subr.mxu0 %v174
    %513 = vmatpush1.msra.mxu0 %v173
    %514 = vmatprep.subr.mxu0 %v176
    %515 = vmatpush1.msra.mxu0 %v175
    %516 = vmatprep.subr.mxu0 %v178
    %517 = vmatpush1.msra.mxu0 %v177
    %518 = vmatprep.subr.mxu0 %v180
    %519 = vmatpush1.msra.mxu0 %v179
    %520 = vmatprep.subr.mxu0 0.0
    %521 = vmatpush1.msra.mxu0 0.0
    %522 = vmatprep.subr.mxu0 0.0
    %523 = vmatpush1.msra.mxu0 0.0
    %524 = vmatprep.subr.mxu0 0.0
    %525 = vmatpush1.msra.mxu0 0.0
    %526 = vmatprep.subr.mxu0 0.0
    %527 = vmatpush1.msra.mxu0 0.0
    %528 = vmatprep.subr.mxu0 0.0
    %529 = vmatpush1.msra.mxu0 0.0
    %530 = vmatprep.subr.mxu0 0.0
    %531 = vmatpush1.msra.mxu0 0.0
    %532 = vmatprep.subr.mxu0 0.0
    %533 = vmatpush1.msra.mxu0 0.0
    %534 = vmatprep.subr.mxu0 0.0
    %535 = vmatpush1.msra.mxu0 0.0
    %536 = vmatprep.subr.mxu0 0.0
    %537 = vmatpush1.msra.mxu0 0.0
    %538 = vmatprep.subr.mxu0 0.0
    %539 = vmatpush1.msra.mxu0 0.0
    %540 = vmatprep.subr.mxu0 0.0
    %541 = vmatpush1.msra.mxu0 0.0
    %542 = vmatprep.subr.mxu0 0.0
    %543 = vmatpush1.msra.mxu0 0.0
    %544 = vmatprep.subr.mxu0 0.0
    %545 = vmatpush1.msra.mxu0 0.0
    %546 = vmatprep.subr.mxu0 0.0
    %547 = vmatpush1.msra.mxu0 0.0
    %548 = vmatprep.subr.mxu0 0.0
    %549 = vmatpush1.msra.mxu0 0.0
    %550 = vmatprep.subr.mxu0 0.0
    %551 = vmatpush1.msra.mxu0 0.0
    %552 = vmatprep.subr.mxu0 0.0
    %553 = vmatpush1.msra.mxu0 0.0
    %554 = vmatprep.subr.mxu0 0.0
    %555 = vmatpush1.msra.mxu0 0.0
    %556 = vmatprep.subr.mxu0 0.0
    %557 = vmatpush1.msra.mxu0 0.0
    %558 = vmatprep.subr.mxu0 0.0
    %559 = vmatpush1.msra.mxu0 0.0
    %560 = vmatprep.subr.mxu0 0.0
    %561 = vmatpush1.msra.mxu0 0.0
    %562 = vmatprep.subr.mxu0 0.0
    %563 = vmatpush1.msra.mxu0 0.0
    %564 = vmatprep.subr.mxu0 0.0
    %565 = vmatpush1.msra.mxu0 0.0
    %566 = vmatprep.subr.mxu0 0.0
    %567 = vmatpush1.msra.mxu0 0.0
    %568 = vmatprep.mubr.f32.mxu0 0.0
    %569 = vmatmul.mubr.f32.gmra.mrb[0].mxu0 %v502
    %v570 = vpop.f32.mrb[0].mxu0
    %v571 = vadd.f32 0.0, %v570
    %v572 = vpop.f32.mrb[0].mxu0
    %v573 = vadd.f32 0.0, %v572
    %574 = vdwg.mxu0
    %v577 = vrot.slane %v571, 2
    %v578 = vrot.slane %v573, 2
    %v581 = vadd.f32 %v155, %v577
    %v582 = vadd.f32 %v157, %v578
    %v583 = vxor.u32 %v581, 2147483648
    %v584 = vmul.f32 %v583, 1.442695
    %v585 = vpow.pop %v584
    %v586 = vadd.f32 %v585, 1.0
    %v587 = vrcp.pop %v586
    %v588 = vmul.f32 1.0, %v587
    %v589 = vtanh.pop %v582
    %v590 = vxor.u32 %v582, 2147483648
    %v591 = vmul.f32 %v590, 1.442695
    %v592 = vpow.pop %v591
    %v593 = vadd.f32 %v592, 1.0
    %v594 = vrcp.pop %v593
    %v595 = vmul.f32 1.0, %v594
    %v597 = vrot.slane %v495, 6
    %v599 = vmul.f32 %v588, %v597
    %v600 = vmul.f32 %v588, %v589
    %602 = vrot.lane.b32.xlu0 %v600, 64
    %v603 = vpop.permute.xlu0 %602
    %v605 = vadd.f32 %v599, %v603
    %v606 = vtanh.pop %v605
    %v607 = vmul.f32 %v595, %v606
    %v609 = vrot.slane %v607, 6
    %610 = vrot.lane.b32.xlu0 %v609, 64
    %v611 = vpop.permute.xlu0 %610
    %v612 = vsel %vm81, %v611, 0
    %614 = vmatprep.subr.mxu0 %v166
    %615 = vmatpush1.msra.mxu0 %v165
    %616 = vmatprep.subr.mxu0 %v168
    %617 = vmatpush1.msra.mxu0 %v167
    %618 = vmatprep.subr.mxu0 %v170
    %619 = vmatpush1.msra.mxu0 %v169
    %620 = vmatprep.subr.mxu0 %v172
    %621 = vmatpush1.msra.mxu0 %v171
    %622 = vmatprep.subr.mxu0 %v174
    %623 = vmatpush1.msra.mxu0 %v173
    %624 = vmatprep.subr.mxu0 %v176
    %625 = vmatpush1.msra.mxu0 %v175
    %626 = vmatprep.subr.mxu0 %v178
    %627 = vmatpush1.msra.mxu0 %v177
    %628 = vmatprep.subr.mxu0 %v180
    %629 = vmatpush1.msra.mxu0 %v179
    %630 = vmatprep.subr.mxu0 0.0
    %631 = vmatpush1.msra.mxu0 0.0
    %632 = vmatprep.subr.mxu0 0.0
    %633 = vmatpush1.msra.mxu0 0.0
    %634 = vmatprep.subr.mxu0 0.0
    %635 = vmatpush1.msra.mxu0 0.0
    %636 = vmatprep.subr.mxu0 0.0
    %637 = vmatpush1.msra.mxu0 0.0
    %638 = vmatprep.subr.mxu0 0.0
    %639 = vmatpush1.msra.mxu0 0.0
    %640 = vmatprep.subr.mxu0 0.0
    %641 = vmatpush1.msra.mxu0 0.0
    %642 = vmatprep.subr.mxu0 0.0
    %643 = vmatpush1.msra.mxu0 0.0
    %644 = vmatprep.subr.mxu0 0.0
    %645 = vmatpush1.msra.mxu0 0.0
    %646 = vmatprep.subr.mxu0 0.0
    %647 = vmatpush1.msra.mxu0 0.0
    %648 = vmatprep.subr.mxu0 0.0
    %649 = vmatpush1.msra.mxu0 0.0
    %650 = vmatprep.subr.mxu0 0.0
    %651 = vmatpush1.msra.mxu0 0.0
    %652 = vmatprep.subr.mxu0 0.0
    %653 = vmatpush1.msra.mxu0 0.0
    %654 = vmatprep.subr.mxu0 0.0
    %655 = vmatpush1.msra.mxu0 0.0
    %656 = vmatprep.subr.mxu0 0.0
    %657 = vmatpush1.msra.mxu0 0.0
    %658 = vmatprep.subr.mxu0 0.0
    %659 = vmatpush1.msra.mxu0 0.0
    %660 = vmatprep.subr.mxu0 0.0
    %661 = vmatpush1.msra.mxu0 0.0
    %662 = vmatprep.subr.mxu0 0.0
    %663 = vmatpush1.msra.mxu0 0.0
    %664 = vmatprep.subr.mxu0 0.0
    %665 = vmatpush1.msra.mxu0 0.0
    %666 = vmatprep.subr.mxu0 0.0
    %667 = vmatpush1.msra.mxu0 0.0
    %668 = vmatprep.subr.mxu0 0.0
    %669 = vmatpush1.msra.mxu0 0.0
    %670 = vmatprep.subr.mxu0 0.0
    %671 = vmatpush1.msra.mxu0 0.0
    %672 = vmatprep.subr.mxu0 0.0
    %673 = vmatpush1.msra.mxu0 0.0
    %674 = vmatprep.subr.mxu0 0.0
    %675 = vmatpush1.msra.mxu0 0.0
    %676 = vmatprep.subr.mxu0 0.0
    %677 = vmatpush1.msra.mxu0 0.0
    %678 = vmatprep.mubr.f32.mxu0 0.0
    %679 = vmatmul.mubr.f32.gmra.mrb[0].mxu0 %v612
    %v680 = vpop.f32.mrb[0].mxu0
    %v681 = vadd.f32 0.0, %v680
    %v682 = vpop.f32.mrb[0].mxu0
    %v683 = vadd.f32 0.0, %v682
    %684 = vdwg.mxu0
    %v685 = vadd.f32 %v161, %v681
    %v686 = vadd.f32 %v163, %v683
    %v687 = vxor.u32 %v685, 2147483648
    %v688 = vmul.f32 %v687, 1.442695
    %v689 = vpow.pop %v688
    %v690 = vadd.f32 %v689, 1.0
    %v691 = vrcp.pop %v690
    %v692 = vmul.f32 1.0, %v691
    %v693 = vtanh.pop %v686
    %v694 = vxor.u32 %v686, 2147483648
    %v695 = vmul.f32 %v694, 1.442695
    %v696 = vpow.pop %v695
    %v697 = vadd.f32 %v696, 1.0
    %v698 = vrcp.pop %v697
    %v699 = vmul.f32 1.0, %v698
    %v701 = vrot.slane %v605, 6
    %v703 = vmul.f32 %v692, %v701
    %v704 = vmul.f32 %v692, %v693
    %706 = vrot.lane.b32.xlu0 %v704, 64
    %v707 = vpop.permute.xlu0 %706
    %v709 = vadd.f32 %v703, %v707
    %v710 = vtanh.pop %v709
    %v711 = vmul.f32 %v699, %v710
    %713 = vrot.lane.b32.xlu0 %v711, 64
    %v714 = vpop.permute.xlu0 %713
    %v715 = vsel %vm81, %v714, 0
    %717 = vmatprep.subr.mxu0 %v166
    %718 = vmatpush1.msra.mxu0 %v165
    %719 = vmatprep.subr.mxu0 %v168
    %720 = vmatpush1.msra.mxu0 %v167
    %721 = vmatprep.subr.mxu0 %v170
    %722 = vmatpush1.msra.mxu0 %v169
    %723 = vmatprep.subr.mxu0 %v172
    %724 = vmatpush1.msra.mxu0 %v171
    %725 = vmatprep.subr.mxu0 %v174
    %726 = vmatpush1.msra.mxu0 %v173
    %727 = vmatprep.subr.mxu0 %v176
    %728 = vmatpush1.msra.mxu0 %v175
    %729 = vmatprep.subr.mxu0 %v178
    %730 = vmatpush1.msra.mxu0 %v177
    %731 = vmatprep.subr.mxu0 %v180
    %732 = vmatpush1.msra.mxu0 %v179
    %733 = vmatprep.subr.mxu0 0.0
    %734 = vmatpush1.msra.mxu0 0.0
    %735 = vmatprep.subr.mxu0 0.0
    %736 = vmatpush1.msra.mxu0 0.0
    %737 = vmatprep.subr.mxu0 0.0
    %738 = vmatpush1.msra.mxu0 0.0
    %739 = vmatprep.subr.mxu0 0.0
    %740 = vmatpush1.msra.mxu0 0.0
    %741 = vmatprep.subr.mxu0 0.0
    %742 = vmatpush1.msra.mxu0 0.0
    %743 = vmatprep.subr.mxu0 0.0
    %744 = vmatpush1.msra.mxu0 0.0
    %745 = vmatprep.subr.mxu0 0.0
    %746 = vmatpush1.msra.mxu0 0.0
    %747 = vmatprep.subr.mxu0 0.0
    %748 = vmatpush1.msra.mxu0 0.0
    %749 = vmatprep.subr.mxu0 0.0
    %750 = vmatpush1.msra.mxu0 0.0
    %751 = vmatprep.subr.mxu0 0.0
    %752 = vmatpush1.msra.mxu0 0.0
    %753 = vmatprep.subr.mxu0 0.0
    %754 = vmatpush1.msra.mxu0 0.0
    %755 = vmatprep.subr.mxu0 0.0
    %756 = vmatpush1.msra.mxu0 0.0
    %757 = vmatprep.subr.mxu0 0.0
    %758 = vmatpush1.msra.mxu0 0.0
    %759 = vmatprep.subr.mxu0 0.0
    %760 = vmatpush1.msra.mxu0 0.0
    %761 = vmatprep.subr.mxu0 0.0
    %762 = vmatpush1.msra.mxu0 0.0
    %763 = vmatprep.subr.mxu0 0.0
    %764 = vmatpush1.msra.mxu0 0.0
    %765 = vmatprep.subr.mxu0 0.0
    %766 = vmatpush1.msra.mxu0 0.0
    %767 = vmatprep.subr.mxu0 0.0
    %768 = vmatpush1.msra.mxu0 0.0
    %769 = vmatprep.subr.mxu0 0.0
    %770 = vmatpush1.msra.mxu0 0.0
    %771 = vmatprep.subr.mxu0 0.0
    %772 = vmatpush1.msra.mxu0 0.0
    %773 = vmatprep.subr.mxu0 0.0
    %774 = vmatpush1.msra.mxu0 0.0
    %775 = vmatprep.subr.mxu0 0.0
    %776 = vmatpush1.msra.mxu0 0.0
    %777 = vmatprep.subr.mxu0 0.0
    %778 = vmatpush1.msra.mxu0 0.0
    %779 = vmatprep.subr.mxu0 0.0
    %780 = vmatpush1.msra.mxu0 0.0
    %781 = vmatprep.mubr.f32.mxu0 0.0
    %782 = vmatmul.mubr.f32.gmra.mrb[0].mxu0 %v715
    %v783 = vpop.f32.mrb[0].mxu0
    %v784 = vadd.f32 0.0, %v783
    %v785 = vpop.f32.mrb[0].mxu0
    %v786 = vadd.f32 0.0, %v785
    %787 = vdwg.mxu0
    %v790 = vrot.slane %v784, 6
    %v791 = vrot.slane %v786, 6
    %v794 = vadd.f32 %v161, %v790
    %v795 = vadd.f32 %v163, %v791
    %v796 = vxor.u32 %v794, 2147483648
    %v797 = vmul.f32 %v796, 1.442695
    %v798 = vpow.pop %v797
    %v799 = vadd.f32 %v798, 1.0
    %v800 = vrcp.pop %v799
    %v801 = vmul.f32 1.0, %v800
    %v802 = vtanh.pop %v795
    %v803 = vxor.u32 %v795, 2147483648
    %v804 = vmul.f32 %v803, 1.442695
    %v805 = vpow.pop %v804
    %v806 = vadd.f32 %v805, 1.0
    %v807 = vrcp.pop %v806
    %v808 = vmul.f32 1.0, %v807
    %v810 = vrot.slane %v709, 6
    %v812 = vmul.f32 %v801, %v810
    %v813 = vmul.f32 %v801, %v802
    %815 = vrot.lane.b32.xlu0 %v813, 64
    %v816 = vpop.permute.xlu0 %815
    %v818 = vadd.f32 %v812, %v816
    %v819 = vtanh.pop %v818
    %v820 = vmul.f32 %v808, %v819
    %v822 = vrot.slane %v820, 2
    %823 = vrot.lane.b32.xlu0 %v822, 64
    %v824 = vpop.permute.xlu0 %823
    %v825 = vsel %vm81, %v824, 0
    %827 = vmatprep.subr.mxu0 %v166
    %828 = vmatpush1.msra.mxu0 %v165
    %829 = vmatprep.subr.mxu0 %v168
    %830 = vmatpush1.msra.mxu0 %v167
    %831 = vmatprep.subr.mxu0 %v170
    %832 = vmatpush1.msra.mxu0 %v169
    %833 = vmatprep.subr.mxu0 %v172
    %834 = vmatpush1.msra.mxu0 %v171
    %835 = vmatprep.subr.mxu0 %v174
    %836 = vmatpush1.msra.mxu0 %v173
    %837 = vmatprep.subr.mxu0 %v176
    %838 = vmatpush1.msra.mxu0 %v175
    %839 = vmatprep.subr.mxu0 %v178
    %840 = vmatpush1.msra.mxu0 %v177
    %841 = vmatprep.subr.mxu0 %v180
    %842 = vmatpush1.msra.mxu0 %v179
    %843 = vmatprep.subr.mxu0 0.0
    %844 = vmatpush1.msra.mxu0 0.0
    %845 = vmatprep.subr.mxu0 0.0
    %846 = vmatpush1.msra.mxu0 0.0
    %847 = vmatprep.subr.mxu0 0.0
    %848 = vmatpush1.msra.mxu0 0.0
    %849 = vmatprep.subr.mxu0 0.0
    %850 = vmatpush1.msra.mxu0 0.0
    %851 = vmatprep.subr.mxu0 0.0
    %852 = vmatpush1.msra.mxu0 0.0
    %853 = vmatprep.subr.mxu0 0.0
    %854 = vmatpush1.msra.mxu0 0.0
    %855 = vmatprep.subr.mxu0 0.0
    %856 = vmatpush1.msra.mxu0 0.0
    %857 = vmatprep.subr.mxu0 0.0
    %858 = vmatpush1.msra.mxu0 0.0
    %859 = vmatprep.subr.mxu0 0.0
    %860 = vmatpush1.msra.mxu0 0.0
    %861 = vmatprep.subr.mxu0 0.0
    %862 = vmatpush1.msra.mxu0 0.0
    %863 = vmatprep.subr.mxu0 0.0
    %864 = vmatpush1.msra.mxu0 0.0
    %865 = vmatprep.subr.mxu0 0.0
    %866 = vmatpush1.msra.mxu0 0.0
    %867 = vmatprep.subr.mxu0 0.0
    %868 = vmatpush1.msra.mxu0 0.0
    %869 = vmatprep.subr.mxu0 0.0
    %870 = vmatpush1.msra.mxu0 0.0
    %871 = vmatprep.subr.mxu0 0.0
    %872 = vmatpush1.msra.mxu0 0.0
    %873 = vmatprep.subr.mxu0 0.0
    %874 = vmatpush1.msra.mxu0 0.0
    %875 = vmatprep.subr.mxu0 0.0
    %876 = vmatpush1.msra.mxu0 0.0
    %877 = vmatprep.subr.mxu0 0.0
    %878 = vmatpush1.msra.mxu0 0.0
    %879 = vmatprep.subr.mxu0 0.0
    %880 = vmatpush1.msra.mxu0 0.0
    %881 = vmatprep.subr.mxu0 0.0
    %882 = vmatpush1.msra.mxu0 0.0
    %883 = vmatprep.subr.mxu0 0.0
    %884 = vmatpush1.msra.mxu0 0.0
    %885 = vmatprep.subr.mxu0 0.0
    %886 = vmatpush1.msra.mxu0 0.0
    %887 = vmatprep.subr.mxu0 0.0
    %888 = vmatpush1.msra.mxu0 0.0
    %889 = vmatprep.subr.mxu0 0.0
    %890 = vmatpush1.msra.mxu0 0.0
    %891 = vmatprep.mubr.f32.mxu0 0.0
    %892 = vmatmul.mubr.f32.gmra.mrb[0].mxu0 %v825
    %v893 = vpop.f32.mrb[0].mxu0
    %v894 = vadd.f32 0.0, %v893
    %v895 = vpop.f32.mrb[0].mxu0
    %v896 = vadd.f32 0.0, %v895
    %897 = vdwg.mxu0
    %v900 = vrot.slane %v894, 4
    %v901 = vrot.slane %v896, 4
    %v904 = vadd.f32 %v161, %v900
    %v905 = vadd.f32 %v163, %v901
    %v906 = vxor.u32 %v904, 2147483648
    %v907 = vmul.f32 %v906, 1.442695
    %v908 = vpow.pop %v907
    %v909 = vadd.f32 %v908, 1.0
    %v910 = vrcp.pop %v909
    %v911 = vmul.f32 1.0, %v910
    %v912 = vtanh.pop %v905
    %v913 = vxor.u32 %v905, 2147483648
    %v914 = vmul.f32 %v913, 1.442695
    %v915 = vpow.pop %v914
    %v916 = vadd.f32 %v915, 1.0
    %v917 = vrcp.pop %v916
    %v918 = vmul.f32 1.0, %v917
    %v920 = vrot.slane %v818, 6
    %v922 = vmul.f32 %v911, %v920
    %v923 = vmul.f32 %v911, %v912
    %925 = vrot.lane.b32.xlu0 %v923, 64
    %v926 = vpop.permute.xlu0 %925
    %v928 = vadd.f32 %v922, %v926
    %v929 = vtanh.pop %v928
    %v930 = vmul.f32 %v918, %v929
    %v932 = vrot.slane %v930, 4
    %933 = vrot.lane.b32.xlu0 %v932, 64
    %v934 = vpop.permute.xlu0 %933
    %v935 = vsel %vm81, %v934, 0
    %937 = vmatprep.subr.mxu0 %v166
    %938 = vmatpush1.msra.mxu0 %v165
    %939 = vmatprep.subr.mxu0 %v168
    %940 = vmatpush1.msra.mxu0 %v167
    %941 = vmatprep.subr.mxu0 %v170
    %942 = vmatpush1.msra.mxu0 %v169
    %943 = vmatprep.subr.mxu0 %v172
    %944 = vmatpush1.msra.mxu0 %v171
    %945 = vmatprep.subr.mxu0 %v174
    %946 = vmatpush1.msra.mxu0 %v173
    %947 = vmatprep.subr.mxu0 %v176
    %948 = vmatpush1.msra.mxu0 %v175
    %949 = vmatprep.subr.mxu0 %v178
    %950 = vmatpush1.msra.mxu0 %v177
    %951 = vmatprep.subr.mxu0 %v180
    %952 = vmatpush1.msra.mxu0 %v179
    %953 = vmatprep.subr.mxu0 0.0
    %954 = vmatpush1.msra.mxu0 0.0
    %955 = vmatprep.subr.mxu0 0.0
    %956 = vmatpush1.msra.mxu0 0.0
    %957 = vmatprep.subr.mxu0 0.0
    %958 = vmatpush1.msra.mxu0 0.0
    %959 = vmatprep.subr.mxu0 0.0
    %960 = vmatpush1.msra.mxu0 0.0
    %961 = vmatprep.subr.mxu0 0.0
    %962 = vmatpush1.msra.mxu0 0.0
    %963 = vmatprep.subr.mxu0 0.0
    %964 = vmatpush1.msra.mxu0 0.0
    %965 = vmatprep.subr.mxu0 0.0
    %966 = vmatpush1.msra.mxu0 0.0
    %967 = vmatprep.subr.mxu0 0.0
    %968 = vmatpush1.msra.mxu0 0.0
    %969 = vmatprep.subr.mxu0 0.0
    %970 = vmatpush1.msra.mxu0 0.0
    %971 = vmatprep.subr.mxu0 0.0
    %972 = vmatpush1.msra.mxu0 0.0
    %973 = vmatprep.subr.mxu0 0.0
    %974 = vmatpush1.msra.mxu0 0.0
    %975 = vmatprep.subr.mxu0 0.0
    %976 = vmatpush1.msra.mxu0 0.0
    %977 = vmatprep.subr.mxu0 0.0
    %978 = vmatpush1.msra.mxu0 0.0
    %979 = vmatprep.subr.mxu0 0.0
    %980 = vmatpush1.msra.mxu0 0.0
    %981 = vmatprep.subr.mxu0 0.0
    %982 = vmatpush1.msra.mxu0 0.0
    %983 = vmatprep.subr.mxu0 0.0
    %984 = vmatpush1.msra.mxu0 0.0
    %985 = vmatprep.subr.mxu0 0.0
    %986 = vmatpush1.msra.mxu0 0.0
    %987 = vmatprep.subr.mxu0 0.0
    %988 = vmatpush1.msra.mxu0 0.0
    %989 = vmatprep.subr.mxu0 0.0
    %990 = vmatpush1.msra.mxu0 0.0
    %991 = vmatprep.subr.mxu0 0.0
    %992 = vmatpush1.msra.mxu0 0.0
    %993 = vmatprep.subr.mxu0 0.0
    %994 = vmatpush1.msra.mxu0 0.0
    %995 = vmatprep.subr.mxu0 0.0
    %996 = vmatpush1.msra.mxu0 0.0
    %997 = vmatprep.subr.mxu0 0.0
    %998 = vmatpush1.msra.mxu0 0.0
    %999 = vmatprep.subr.mxu0 0.0
    %1000 = vmatpush1.msra.mxu0 0.0
    %1001 = vmatprep.mubr.f32.mxu0 0.0
    %1002 = vmatmul.mubr.f32.gmra.mrb[0].mxu0 %v935
    %v1003 = vpop.f32.mrb[0].mxu0
    %v1004 = vadd.f32 0.0, %v1003
    %v1005 = vpop.f32.mrb[0].mxu0
    %v1006 = vadd.f32 0.0, %v1005
    %1007 = vdwg.mxu0
    %v1010 = vrot.slane %v1004, 2
    %v1011 = vrot.slane %v1006, 2
    %v1014 = vadd.f32 %v161, %v1010
    %v1015 = vadd.f32 %v163, %v1011
    %v1016 = vxor.u32 %v1014, 2147483648
    %v1017 = vmul.f32 %v1016, 1.442695
    %v1018 = vpow.pop %v1017
    %v1019 = vadd.f32 %v1018, 1.0
    %v1020 = vrcp.pop %v1019
    %v1021 = vmul.f32 1.0, %v1020
    %v1022 = vtanh.pop %v1015
    %v1023 = vxor.u32 %v1015, 2147483648
    %v1024 = vmul.f32 %v1023, 1.442695
    %v1025 = vpow.pop %v1024
    %v1026 = vadd.f32 %v1025, 1.0
    %v1027 = vrcp.pop %v1026
    %v1028 = vmul.f32 1.0, %v1027
    %v1030 = vrot.slane %v928, 6
    %v1032 = vmul.f32 %v1021, %v1030
    %v1033 = vmul.f32 %v1021, %v1022
    %1035 = vrot.lane.b32.xlu0 %v1033, 64
    %v1036 = vpop.permute.xlu0 %1035
    %v1038 = vadd.f32 %v1032, %v1036
    %v1039 = vtanh.pop %v1038
    %v1040 = vmul.f32 %v1028, %v1039
    %v1042 = vunpack.c.l.s4 1966171168
    %v1043 = vunpack.c.0.s8 %v1042
    %v1044 = vlaneseq
    %v1045 = vshrl.u32 %v1044, 7
    %v1046 = vsub.s32 %v1043, %v1045
    %v1047 = vrot.slane %v278, %v1046
    %v1048 = vcombine.high %v1047, %v1047
    %v1050 = vunpack.c.l.s4 1966171168
    %v1051 = vunpack.c.0.s8 %v1050
    %v1052 = vlaneseq
    %v1053 = vshrl.u32 %v1052, 7
    %v1054 = vsub.s32 %v1051, %v1053
    %v1055 = vrot.slane %v1047, %v1054
    %v1057 = vunpack.c.l.s4 1966171168
    %v1058 = vunpack.c.0.s8 %v1057
    %v1059 = vlaneseq
    %v1060 = vshrl.u32 %v1059, 7
    %v1061 = vsub.s32 %v1058, %v1060
    %v1062 = vrot.slane %v1048, %v1061
    %v1066 = vunpack.c.l.s4 1966171168
    %v1067 = vunpack.c.0.s8 %v1066
    %v1068 = vlaneseq
    %v1069 = vshrl.u32 %v1068, 7
    %v1070 = vsub.s32 %v1067, %v1069
    %v1071 = vrot.slane %v387, %v1070
    %v1072 = vcombine.high %v1071, %v1071
    %v1074 = vunpack.c.l.s4 1966171168
    %v1075 = vunpack.c.0.s8 %v1074
    %v1076 = vlaneseq
    %v1077 = vshrl.u32 %v1076, 7
    %v1078 = vsub.s32 %v1075, %v1077
    %v1079 = vrot.slane %v1071, %v1078
    %v1081 = vunpack.c.l.s4 1966171168
    %v1082 = vunpack.c.0.s8 %v1081
    %v1083 = vlaneseq
    %v1084 = vshrl.u32 %v1083, 7
    %v1085 = vsub.s32 %v1082, %v1084
    %v1086 = vrot.slane %v1072, %v1085
    %v1087 = vcombine.high %v1079, %v1079
    %v1088 = vcombine.high %v1086, %v1086
    %v1089 = vcombine.high %v497, %v497
    %v1091 = vunpack.c.l.s4 1966171168
    %v1092 = vunpack.c.0.s8 %v1091
    %v1093 = vlaneseq
    %v1094 = vshrl.u32 %v1093, 7
    %v1095 = vsub.s32 %v1092, %v1094
    %v1096 = vrot.slane %v1089, %v1095
    %v1097 = vcombine.high %v1096, %v1096
    %v1099 = vunpack.c.l.s4 1966171168
    %v1100 = vunpack.c.0.s8 %v1099
    %v1101 = vlaneseq
    %v1102 = vshrl.u32 %v1101, 7
    %v1103 = vsub.s32 %v1100, %v1102
    %v1104 = vrot.slane %v1096, %v1103
    %v1106 = vunpack.c.l.s4 1966171168
    %v1107 = vunpack.c.0.s8 %v1106
    %v1108 = vlaneseq
    %v1109 = vshrl.u32 %v1108, 7
    %v1110 = vsub.s32 %v1107, %v1109
    %v1111 = vrot.slane %v1097, %v1110
    %v1112 = vcombine.high %v607, %v607
    %v1114 = vunpack.c.l.s4 1966171168
    %v1115 = vunpack.c.0.s8 %v1114
    %v1116 = vlaneseq
    %v1117 = vshrl.u32 %v1116, 7
    %v1118 = vsub.s32 %v1115, %v1117
    %v1119 = vrot.slane %v1112, %v1118
    %v1120 = vcombine.high %v1119, %v1119
    %v1122 = vunpack.c.l.s4 1966171168
    %v1123 = vunpack.c.0.s8 %v1122
    %v1124 = vlaneseq
    %v1125 = vshrl.u32 %v1124, 7
    %v1126 = vsub.s32 %v1123, %v1125
    %v1127 = vrot.slane %v1119, %v1126
    %v1129 = vunpack.c.l.s4 1966171168
    %v1130 = vunpack.c.0.s8 %v1129
    %v1131 = vlaneseq
    %v1132 = vshrl.u32 %v1131, 7
    %v1133 = vsub.s32 %v1130, %v1132
    %v1134 = vrot.slane %v1120, %v1133
    %v1135 = vcombine.high %v1127, %v1127
    %v1136 = vcombine.high %v1134, %v1134
    %v1138 = vunpack.c.l.s4 1966171168
    %v1139 = vunpack.c.0.s8 %v1138
    %v1140 = vlaneseq
    %v1141 = vshrl.u32 %v1140, 7
    %v1142 = vsub.s32 %v1139, %v1141
    %v1143 = vrot.slane %v711, %v1142
    %v1144 = vcombine.high %v1143, %v1143
    %v1146 = vunpack.c.l.s4 1966171168
    %v1147 = vunpack.c.0.s8 %v1146
    %v1148 = vlaneseq
    %v1149 = vshrl.u32 %v1148, 7
    %v1150 = vsub.s32 %v1147, %v1149
    %v1151 = vrot.slane %v1143, %v1150
    %v1153 = vunpack.c.l.s4 1966171168
    %v1154 = vunpack.c.0.s8 %v1153
    %v1155 = vlaneseq
    %v1156 = vshrl.u32 %v1155, 7
    %v1157 = vsub.s32 %v1154, %v1156
    %v1158 = vrot.slane %v1144, %v1157
    %v1160 = vunpack.c.l.s4 1966171168
    %v1161 = vunpack.c.0.s8 %v1160
    %v1162 = vlaneseq
    %v1163 = vshrl.u32 %v1162, 7
    %v1164 = vsub.s32 %v1161, %v1163
    %v1165 = vrot.slane %v820, %v1164
    %v1166 = vcombine.high %v1165, %v1165
    %v1168 = vunpack.c.l.s4 1966171168
    %v1169 = vunpack.c.0.s8 %v1168
    %v1170 = vlaneseq
    %v1171 = vshrl.u32 %v1170, 7
    %v1172 = vsub.s32 %v1169, %v1171
    %v1173 = vrot.slane %v1165, %v1172
    %v1175 = vunpack.c.l.s4 1966171168
    %v1176 = vunpack.c.0.s8 %v1175
    %v1177 = vlaneseq
    %v1178 = vshrl.u32 %v1177, 7
    %v1179 = vsub.s32 %v1176, %v1178
    %v1180 = vrot.slane %v1166, %v1179
    %v1181 = vcombine.high %v1173, %v1173
    %v1182 = vcombine.high %v1180, %v1180
    %v1183 = vcombine.high %v930, %v930
    %v1185 = vunpack.c.l.s4 1966171168
    %v1186 = vunpack.c.0.s8 %v1185
    %v1187 = vlaneseq
    %v1188 = vshrl.u32 %v1187, 7
    %v1189 = vsub.s32 %v1186, %v1188
    %v1190 = vrot.slane %v1183, %v1189
    %v1191 = vcombine.high %v1190, %v1190
    %v1193 = vunpack.c.l.s4 1966171168
    %v1194 = vunpack.c.0.s8 %v1193
    %v1195 = vlaneseq
    %v1196 = vshrl.u32 %v1195, 7
    %v1197 = vsub.s32 %v1194, %v1196
    %v1198 = vrot.slane %v1190, %v1197
    %v1200 = vunpack.c.l.s4 1966171168
    %v1201 = vunpack.c.0.s8 %v1200
    %v1202 = vlaneseq
    %v1203 = vshrl.u32 %v1202, 7
    %v1204 = vsub.s32 %v1201, %v1203
    %v1205 = vrot.slane %v1191, %v1204
    %v1207 = vcombine.high %v1040, %v1040
    %v1209 = vunpack.c.l.s4 1966171168
    %v1210 = vunpack.c.0.s8 %v1209
    %v1211 = vlaneseq
    %v1212 = vshrl.u32 %v1211, 7
    %v1213 = vsub.s32 %v1210, %v1212
    %v1214 = vrot.slane %v1207, %v1213
    %v1215 = vcombine.high %v1214, %v1214
    %v1217 = vunpack.c.l.s4 1966171168
    %v1218 = vunpack.c.0.s8 %v1217
    %v1219 = vlaneseq
    %v1220 = vshrl.u32 %v1219, 7
    %v1221 = vsub.s32 %v1218, %v1220
    %v1222 = vrot.slane %v1214, %v1221
    %v1224 = vunpack.c.l.s4 1966171168
    %v1225 = vunpack.c.0.s8 %v1224
    %v1226 = vlaneseq
    %v1227 = vshrl.u32 %v1226, 7
    %v1228 = vsub.s32 %v1225, %v1227
    %v1229 = vrot.slane %v1215, %v1228
    %v1230 = vcombine.high %v1222, %v1222
    %v1231 = vcombine.high %v1229, %v1229
    %v1234 = vlaneseq
    %v1235 = vshrl.u32 %v1234, 7
    %v1236 = vsub.s32 0, %v1235
    %v1237 = vrot.slane %v1087, %v1236
    %v1238 = vlaneseq
    %v1239 = vshrl.u32 %v1238, 7
    %v1240 = vsub.s32 0, %v1239
    %v1241 = vrot.slane %v1088, %v1240
    %v1244 = vlaneseq
    %v1245 = vshrl.u32 %v1244, 7
    %v1246 = vsub.s32 0, %v1245
    %v1247 = vrot.slane %v1104, %v1246
    %v1248 = vlaneseq
    %v1249 = vshrl.u32 %v1248, 7
    %v1250 = vsub.s32 0, %v1249
    %v1251 = vrot.slane %v1111, %v1250
    %v1254 = vlaneseq
    %v1255 = vshrl.u32 %v1254, 7
    %v1256 = vsub.s32 0, %v1255
    %v1257 = vrot.slane %v1135, %v1256
    %v1258 = vlaneseq
    %v1259 = vshrl.u32 %v1258, 7
    %v1260 = vsub.s32 0, %v1259
    %v1261 = vrot.slane %v1136, %v1260
    %v1264 = vlaneseq
    %v1265 = vshrl.u32 %v1264, 7
    %v1266 = vsub.s32 0, %v1265
    %v1267 = vrot.slane %v1151, %v1266
    %v1268 = vlaneseq
    %v1269 = vshrl.u32 %v1268, 7
    %v1270 = vsub.s32 0, %v1269
    %v1271 = vrot.slane %v1158, %v1270
    %v1274 = vlaneseq
    %v1275 = vshrl.u32 %v1274, 7
    %v1276 = vsub.s32 0, %v1275
    %v1277 = vrot.slane %v1181, %v1276
    %v1278 = vlaneseq
    %v1279 = vshrl.u32 %v1278, 7
    %v1280 = vsub.s32 0, %v1279
    %v1281 = vrot.slane %v1182, %v1280
    %v1284 = vlaneseq
    %v1285 = vshrl.u32 %v1284, 7
    %v1286 = vsub.s32 0, %v1285
    %v1287 = vrot.slane %v1198, %v1286
    %v1288 = vlaneseq
    %v1289 = vshrl.u32 %v1288, 7
    %v1290 = vsub.s32 0, %v1289
    %v1291 = vrot.slane %v1205, %v1290
    %v1294 = vlaneseq
    %v1295 = vshrl.u32 %v1294, 7
    %v1296 = vsub.s32 0, %v1295
    %v1297 = vrot.slane %v1230, %v1296
    %v1298 = vlaneseq
    %v1299 = vshrl.u32 %v1298, 7
    %v1300 = vsub.s32 0, %v1299
    %v1301 = vrot.slane %v1231, %v1300
    %vm1304 = vcmask 1040384
    %v1305 = vsel %vm1304, %v1055, %v1237
    %v1306 = vsel %vm1304, %v1062, %v1241
    %vm1307 = vcmask 1041408
    %v1308 = vsel %vm1307, %v1305, %v1247
    %v1309 = vsel %vm1307, %v1306, %v1251
    %vm1310 = vcmask 1042432
    %v1311 = vsel %vm1310, %v1308, %v1257
    %v1312 = vsel %vm1310, %v1309, %v1261
    %vm1313 = vcmask 1043456
    %v1314 = vsel %vm1313, %v1311, %v1267
    %v1315 = vsel %vm1313, %v1312, %v1271
    %vm1316 = vcmask 1044480
    %v1317 = vsel %vm1316, %v1314, %v1277
    %v1318 = vsel %vm1316, %v1315, %v1281
    %vm1319 = vcmask 1045504
    %v1320 = vsel %vm1319, %v1317, %v1287
    %v1321 = vsel %vm1319, %v1318, %v1291
    %vm1322 = vcmask 1046528
    %v1323 = vsel %vm1322, %v1320, %v1297
    %v1324 = vsel %vm1322, %v1321, %v1301
    %v1325 = vlaneseq
    %v1326 = vshrl.u32 %v1325, 7
    %v1327 = vsub.s32 0, %v1326
    %v1328 = vrot.slane %v1055, %v1327
    %v1329 = vlaneseq
    %v1330 = vshrl.u32 %v1329, 7
    %v1331 = vsub.s32 0, %v1330
    %v1332 = vrot.slane %v1062, %v1331
    %v1335 = vsel %vm1304, %v1230, %v1287
    %v1336 = vsel %vm1304, %v1231, %v1291
    %v1337 = vsel %vm1307, %v1335, %v1277
    %v1338 = vsel %vm1307, %v1336, %v1281
    %v1339 = vsel %vm1310, %v1337, %v1267
    %v1340 = vsel %vm1310, %v1338, %v1271
    %v1341 = vsel %vm1313, %v1339, %v1257
    %v1342 = vsel %vm1313, %v1340, %v1261
    %v1343 = vsel %vm1316, %v1341, %v1247
    %v1344 = vsel %vm1316, %v1342, %v1251
    %v1345 = vsel %vm1319, %v1343, %v1237
    %v1346 = vsel %vm1319, %v1344, %v1241
    %v1347 = vsel %vm1322, %v1345, %v1328
    %v1348 = vsel %vm1322, %v1346, %v1332
    %1351 = vrot.lane.b32.xlu0 %v1323, 64
    %v1352 = vpop.permute.xlu0 %1351
    %1353 = vrot.lane.b32.xlu0 %v1324, 64
    %v1354 = vpop.permute.xlu0 %1353
    %1359 = vrot.lane.b32.xlu0 %v1347, 64
    %v1360 = vpop.permute.xlu0 %1359
    %1361 = vrot.lane.b32.xlu0 %v1348, 64
    %v1362 = vpop.permute.xlu0 %1361
    %vm1365 = vcmask 261120
    %v1366 = vsel %vm1365, %v1352, %v1360
    %v1367 = vsel %vm1365, %v1354, %v1362
    %v1368 = vpack.c.bf16 %v1367, %v1366
    %v1369 = vld [vmem:[%s4] sm:$0xff]
    %v1370 = vld [vmem:[%s4 + $0x8] sm:$0xf]
    %v1371 = vld [vmem:[%s4 + $0xc] sm:$0xff]
    %v1372 = vld [vmem:[%s4 + $0x14] sm:$0xf]
    %v1373 = vld [vmem:[%s4 + $0x18] sm:$0xff]
    %v1374 = vld [vmem:[%s4 + $0x20] sm:$0xf]
    %v1375 = vld [vmem:[%s4 + $0x24] sm:$0xff]
    %v1376 = vld [vmem:[%s4 + $0x2c] sm:$0xf]
    %v1377 = vld [vmem:[%s4 + $0x30] sm:$0xff]
    %v1378 = vld [vmem:[%s4 + $0x38] sm:$0xf]
    %v1379 = vld [vmem:[%s4 + $0x3c] sm:$0xff]
    %v1380 = vld [vmem:[%s4 + $0x44] sm:$0xf]
    %v1381 = vld [vmem:[%s4 + $0x48] sm:$0xff]
    %v1382 = vld [vmem:[%s4 + $0x50] sm:$0xf]
    %v1383 = vld [vmem:[%s4 + $0x54] sm:$0xff]
    %v1384 = vld [vmem:[%s4 + $0x5c] sm:$0xf]
    %v1401 = vunpack.c.l.b16 %v1369
    %v1402 = vunpack.c.h.b16 %v1369
    %v1403 = vunpack.c.l.b16 %v1370
    %v1404 = vunpack.c.l.b16 %v1371
    %v1405 = vunpack.c.h.b16 %v1371
    %v1406 = vunpack.c.l.b16 %v1372
    %v1407 = vunpack.c.l.b16 %v1373
    %v1408 = vunpack.c.h.b16 %v1373
    %v1409 = vunpack.c.l.b16 %v1374
    %v1410 = vunpack.c.l.b16 %v1375
    %v1411 = vunpack.c.h.b16 %v1375
    %v1412 = vunpack.c.l.b16 %v1376
    %v1413 = vunpack.c.l.b16 %v1377
    %v1414 = vunpack.c.h.b16 %v1377
    %v1415 = vunpack.c.l.b16 %v1378
    %v1416 = vunpack.c.l.b16 %v1379
    %v1417 = vunpack.c.h.b16 %v1379
    %v1418 = vunpack.c.l.b16 %v1380
    %v1419 = vunpack.c.l.b16 %v1381
    %v1420 = vunpack.c.h.b16 %v1381
    %v1421 = vunpack.c.l.b16 %v1382
    %v1422 = vunpack.c.l.b16 %v1383
    %v1423 = vunpack.c.h.b16 %v1383
    %v1424 = vunpack.c.l.b16 %v1384
    %v1425 = vpack.c.b16 %v1404, %v1401
    %v1426 = vpack.c.b16 %v1405, %v1402
    %v1427 = vpack.c.b16 %v1406, %v1403
    %v1428 = vpack.c.b16 %v1410, %v1407
    %v1429 = vpack.c.b16 %v1411, %v1408
    %v1430 = vpack.c.b16 %v1412, %v1409
    %v1431 = vpack.c.b16 %v1416, %v1413
    %v1432 = vpack.c.b16 %v1417, %v1414
    %v1433 = vpack.c.b16 %v1418, %v1415
    %v1434 = vpack.c.b16 %v1422, %v1419
    %v1435 = vpack.c.b16 %v1423, %v1420
    %v1436 = vpack.c.b16 %v1424, %v1421
    %v1450 = vsel %vm81, %v1368, 0
    %1452 = vmatprep.subr.bf16.mxu0 %v1426
    %1453 = vmatpush1.bf16.msra.mxu0 %v1425
    %1454 = vmatprep.subr.bf16.mxu0 %v1429
    %1455 = vmatpush1.bf16.msra.mxu0 %v1428
    %1456 = vmatprep.subr.bf16.mxu0 %v1432
    %1457 = vmatpush1.bf16.msra.mxu0 %v1431
    %1458 = vmatprep.subr.bf16.mxu0 %v1435
    %1459 = vmatpush1.bf16.msra.mxu0 %v1434
    %1460 = vmatprep.subr.bf16.mxu0 0
    %1461 = vmatpush1.bf16.msra.mxu0 0
    %1462 = vmatprep.subr.bf16.mxu0 0
    %1463 = vmatpush1.bf16.msra.mxu0 0
    %1464 = vmatprep.subr.bf16.mxu0 0
    %1465 = vmatpush1.bf16.msra.mxu0 0
    %1466 = vmatprep.subr.bf16.mxu0 0
    %1467 = vmatpush1.bf16.msra.mxu0 0
    %1468 = vmatprep.subr.bf16.mxu0 0
    %1469 = vmatpush1.bf16.msra.mxu0 0
    %1470 = vmatprep.subr.bf16.mxu0 0
    %1471 = vmatpush1.bf16.msra.mxu0 0
    %1472 = vmatprep.subr.bf16.mxu0 0
    %1473 = vmatpush1.bf16.msra.mxu0 0
    %1474 = vmatprep.subr.bf16.mxu0 0
    %1475 = vmatpush1.bf16.msra.mxu0 0
    %1476 = vmatprep.subr.bf16.mxu0 0
    %1477 = vmatpush1.bf16.msra.mxu0 0
    %1478 = vmatprep.subr.bf16.mxu0 0
    %1479 = vmatpush1.bf16.msra.mxu0 0
    %1480 = vmatprep.subr.bf16.mxu0 0
    %1481 = vmatpush1.bf16.msra.mxu0 0
    %1482 = vmatprep.subr.bf16.mxu0 0
    %1483 = vmatpush1.bf16.msra.mxu0 0
    %1484 = vmatprep.mubr.bf16.mxu0 0
    %1485 = vmatmul.mubr.bf16.gmra.mrb[0].mxu0 %v1450
    %v1486 = vpop.f32.mrb[0].mxu0
    %v1487 = vadd.f32 0.0, %v1486
    %v1488 = vpop.f32.mrb[0].mxu0
    %v1489 = vadd.f32 0.0, %v1488
    %v1490 = vpop.f32.mrb[0].mxu0
    %v1491 = vadd.f32 0.0, %v1490
    %v1492 = vpop.f32.mrb[0].mxu0
    %v1493 = vadd.f32 0.0, %v1492
    %1494 = vdwg.mxu0
    %1495 = vmatprep.subr.bf16.mxu0 0
    %1496 = vmatpush1.bf16.msra.mxu0 %v1427
    %1497 = vmatprep.subr.bf16.mxu0 0
    %1498 = vmatpush1.bf16.msra.mxu0 %v1430
    %1499 = vmatprep.subr.bf16.mxu0 0
    %1500 = vmatpush1.bf16.msra.mxu0 %v1433
    %1501 = vmatprep.subr.bf16.mxu0 0
    %1502 = vmatpush1.bf16.msra.mxu0 %v1436
    %1503 = vmatprep.subr.bf16.mxu0 0
    %1504 = vmatpush1.bf16.msra.mxu0 0
    %1505 = vmatprep.subr.bf16.mxu0 0
    %1506 = vmatpush1.bf16.msra.mxu0 0
    %1507 = vmatprep.subr.bf16.mxu0 0
    %1508 = vmatpush1.bf16.msra.mxu0 0
    %1509 = vmatprep.subr.bf16.mxu0 0
    %1510 = vmatpush1.bf16.msra.mxu0 0
    %1511 = vmatprep.subr.bf16.mxu0 0
    %1512 = vmatpush1.bf16.msra.mxu0 0
    %1513 = vmatprep.subr.bf16.mxu0 0
    %1514 = vmatpush1.bf16.msra.mxu0 0
    %1515 = vmatprep.subr.bf16.mxu0 0
    %1516 = vmatpush1.bf16.msra.mxu0 0
    %1517 = vmatprep.subr.bf16.mxu0 0
    %1518 = vmatpush1.bf16.msra.mxu0 0
    %1519 = vmatprep.subr.bf16.mxu0 0
    %1520 = vmatpush1.bf16.msra.mxu0 0
    %1521 = vmatprep.subr.bf16.mxu0 0
    %1522 = vmatpush1.bf16.msra.mxu0 0
    %1523 = vmatprep.subr.bf16.mxu0 0
    %1524 = vmatpush1.bf16.msra.mxu0 0
    %1525 = vmatprep.subr.bf16.mxu0 0
    %1526 = vmatpush1.bf16.msra.mxu0 0
    %1527 = vmatprep.mubr.bf16.mxu0 0
    %1528 = vmatmul.mubr.bf16.gmra.mrb[0].mxu0 %v1450
    %v1529 = vpop.f32.mrb[0].mxu0
    %v1530 = vadd.f32 0.0, %v1529
    %v1531 = vpop.f32.mrb[0].mxu0
    %v1532 = vpop.f32.mrb[0].mxu0
    %v1533 = vadd.f32 0.0, %v1532
    %v1534 = vpop.f32.mrb[0].mxu0
    %1535 = vdwg.mxu0
    %v1536 = vpack.c.bf16 %v1491, %v1487
    %v1537 = vpack.c.bf16 %v1493, %v1489
    %v1538 = vpack.c.bf16 %v1533, %v1530
    %v1539 = vld [vmem:[#allocation2] sm:$0xff]
    %v1540 = vld [vmem:[#allocation2 + $0x8] sm:$0xf]
    %v1541 = vld [vmem:[#allocation2 + $0xc] sm:$0xff]
    %v1542 = vld [vmem:[#allocation2 + $0x14] sm:$0xf]
    %v1543 = vld [vmem:[#allocation2 + $0x18] sm:$0xff]
    %v1544 = vld [vmem:[#allocation2 + $0x20] sm:$0xf]
    %v1545 = vld [vmem:[#allocation2 + $0x24] sm:$0xff]
    %v1546 = vld [vmem:[#allocation2 + $0x2c] sm:$0xf]
    %v1547 = vld [vmem:[#allocation2 + $0x30] sm:$0xff]
    %v1548 = vld [vmem:[#allocation2 + $0x38] sm:$0xf]
    %v1549 = vld [vmem:[#allocation2 + $0x3c] sm:$0xff]
    %v1550 = vld [vmem:[#allocation2 + $0x44] sm:$0xf]
    %v1551 = vld [vmem:[#allocation2 + $0x48] sm:$0xff]
    %v1552 = vld [vmem:[#allocation2 + $0x50] sm:$0xf]
    %v1553 = vld [vmem:[#allocation2 + $0x54] sm:$0xff]
    %v1554 = vld [vmem:[#allocation2 + $0x5c] sm:$0xf]
    %v1555 = vld [vmem:[#allocation2 + $0x60] sm:$0xff]
    %v1556 = vld [vmem:[#allocation2 + $0x68] sm:$0xf]
    %v1557 = vld [vmem:[#allocation2 + $0x6c] sm:$0xff]
    %v1558 = vld [vmem:[#allocation2 + $0x74] sm:$0xf]
    %v1559 = vld [vmem:[#allocation2 + $0x78] sm:$0xff]
    %v1560 = vld [vmem:[#allocation2 + $0x80] sm:$0xf]
    %v1561 = vld [vmem:[#allocation2 + $0x84] sm:$0xff]
    %v1562 = vld [vmem:[#allocation2 + $0x8c] sm:$0xf]
    %v1563 = vld [vmem:[#allocation2 + $0x90] sm:$0xff]
    %v1564 = vld [vmem:[#allocation2 + $0x98] sm:$0xf]
    %v1565 = vld [vmem:[#allocation2 + $0x9c] sm:$0xff]
    %v1566 = vld [vmem:[#allocation2 + $0xa4] sm:$0xf]
    %v1567 = vld [vmem:[#allocation2 + $0xa8] sm:$0xff]
    %v1568 = vld [vmem:[#allocation2 + $0xb0] sm:$0xf]
    %v1569 = vld [vmem:[#allocation2 + $0xb4] sm:$0xff]
    %v1570 = vld [vmem:[#allocation2 + $0xbc] sm:$0xf]
    %v1571 = vld [vmem:[#allocation2 + $0xc0] sm:$0xff]
    %v1572 = vld [vmem:[#allocation2 + $0xc8] sm:$0xf]
    %v1573 = vld [vmem:[#allocation2 + $0xcc] sm:$0xff]
    %v1574 = vld [vmem:[#allocation2 + $0xd4] sm:$0xf]
    %v1575 = vld [vmem:[#allocation2 + $0xd8] sm:$0xff]
    %v1576 = vld [vmem:[#allocation2 + $0xe0] sm:$0xf]
    %v1577 = vld [vmem:[#allocation2 + $0xe4] sm:$0xff]
    %v1578 = vld [vmem:[#allocation2 + $0xec] sm:$0xf]
    %v1579 = vld [vmem:[#allocation2 + $0xf0] sm:$0xff]
    %v1580 = vld [vmem:[#allocation2 + $0xf8] sm:$0xf]
    %v1581 = vld [vmem:[#allocation2 + $0xfc] sm:$0xff]
    %v1582 = vld [vmem:[#allocation2 + $0x104] sm:$0xf]
    %v1583 = vld [vmem:[#allocation2 + $0x108] sm:$0xff]
    %v1584 = vld [vmem:[#allocation2 + $0x110] sm:$0xf]
    %v1585 = vld [vmem:[#allocation2 + $0x114] sm:$0xff]
    %v1586 = vld [vmem:[#allocation2 + $0x11c] sm:$0xf]
    %v1587 = vld [vmem:[#allocation2 + $0x120] sm:$0xff]
    %v1588 = vld [vmem:[#allocation2 + $0x128] sm:$0xf]
    %v1589 = vld [vmem:[#allocation2 + $0x12c] sm:$0xff]
    %v1590 = vld [vmem:[#allocation2 + $0x134] sm:$0xf]
    %v1591 = vld [vmem:[#allocation2 + $0x138] sm:$0xff]
    %v1592 = vld [vmem:[#allocation2 + $0x140] sm:$0xf]
    %v1593 = vld [vmem:[#allocation2 + $0x144] sm:$0xff]
    %v1594 = vld [vmem:[#allocation2 + $0x14c] sm:$0xf]
    %v1595 = vld [vmem:[#allocation2 + $0x150] sm:$0xff]
    %v1596 = vld [vmem:[#allocation2 + $0x158] sm:$0xf]
    %v1597 = vld [vmem:[#allocation2 + $0x15c] sm:$0xff]
    %v1598 = vld [vmem:[#allocation2 + $0x164] sm:$0xf]
    %v1599 = vld [vmem:[#allocation2 + $0x168] sm:$0xff]
    %v1600 = vld [vmem:[#allocation2 + $0x170] sm:$0xf]
    %v1601 = vld [vmem:[#allocation2 + $0x174] sm:$0xff]
    %v1602 = vld [vmem:[#allocation2 + $0x17c] sm:$0xf]
    %v1603 = vld [vmem:[#allocation2 + $0x180] sm:$0xff]
    %v1604 = vld [vmem:[#allocation2 + $0x188] sm:$0xf]
    %v1605 = vld [vmem:[#allocation2 + $0x18c] sm:$0xff]
    %v1606 = vld [vmem:[#allocation2 + $0x194] sm:$0xf]
    %v1607 = vld [vmem:[#allocation2 + $0x198] sm:$0xff]
    %v1608 = vld [vmem:[#allocation2 + $0x1a0] sm:$0xf]
    %v1609 = vld [vmem:[#allocation2 + $0x1a4] sm:$0xff]
    %v1610 = vld [vmem:[#allocation2 + $0x1ac] sm:$0xf]
    %v1611 = vld [vmem:[#allocation2 + $0x1b0] sm:$0xff]
    %v1612 = vld [vmem:[#allocation2 + $0x1b8] sm:$0xf]
    %v1613 = vld [vmem:[#allocation2 + $0x1bc] sm:$0xff]
    %v1614 = vld [vmem:[#allocation2 + $0x1c4] sm:$0xf]
    %v1615 = vld [vmem:[#allocation2 + $0x1c8] sm:$0xff]
    %v1616 = vld [vmem:[#allocation2 + $0x1d0] sm:$0xf]
    %v1617 = vld [vmem:[#allocation2 + $0x1d4] sm:$0xff]
    %v1618 = vld [vmem:[#allocation2 + $0x1dc] sm:$0xf]
    %v1619 = vld [vmem:[#allocation2 + $0x1e0] sm:$0xff]
    %v1620 = vld [vmem:[#allocation2 + $0x1e8] sm:$0xf]
    %v1621 = vld [vmem:[#allocation2 + $0x1ec] sm:$0xff]
    %v1622 = vld [vmem:[#allocation2 + $0x1f4] sm:$0xf]
    %v1623 = vld [vmem:[#allocation2 + $0x1f8] sm:$0xff]
    %v1624 = vld [vmem:[#allocation2 + $0x200] sm:$0xf]
    %v1625 = vld [vmem:[#allocation2 + $0x204] sm:$0xff]
    %v1626 = vld [vmem:[#allocation2 + $0x20c] sm:$0xf]
    %v1627 = vld [vmem:[#allocation2 + $0x210] sm:$0xff]
    %v1628 = vld [vmem:[#allocation2 + $0x218] sm:$0xf]
    %v1629 = vld [vmem:[#allocation2 + $0x21c] sm:$0xff]
    %v1630 = vld [vmem:[#allocation2 + $0x224] sm:$0xf]
    %v1631 = vld [vmem:[#allocation2 + $0x228] sm:$0xff]
    %v1632 = vld [vmem:[#allocation2 + $0x230] sm:$0xf]
    %v1633 = vld [vmem:[#allocation2 + $0x234] sm:$0xff]
    %v1634 = vld [vmem:[#allocation2 + $0x23c] sm:$0xf]
    %v1731 = vunpack.c.l.b16 %v1539
    %v1732 = vunpack.c.h.b16 %v1539
    %v1733 = vunpack.c.l.b16 %v1540
    %v1734 = vunpack.c.l.b16 %v1541
    %v1735 = vunpack.c.h.b16 %v1541
    %v1736 = vunpack.c.l.b16 %v1542
    %v1737 = vunpack.c.l.b16 %v1543
    %v1738 = vunpack.c.h.b16 %v1543
    %v1739 = vunpack.c.l.b16 %v1544
    %v1740 = vunpack.c.l.b16 %v1545
    %v1741 = vunpack.c.h.b16 %v1545
    %v1742 = vunpack.c.l.b16 %v1546
    %v1743 = vunpack.c.l.b16 %v1547
    %v1744 = vunpack.c.h.b16 %v1547
    %v1745 = vunpack.c.l.b16 %v1548
    %v1746 = vunpack.c.l.b16 %v1549
    %v1747 = vunpack.c.h.b16 %v1549
    %v1748 = vunpack.c.l.b16 %v1550
    %v1749 = vunpack.c.l.b16 %v1551
    %v1750 = vunpack.c.h.b16 %v1551
    %v1751 = vunpack.c.l.b16 %v1552
    %v1752 = vunpack.c.l.b16 %v1553
    %v1753 = vunpack.c.h.b16 %v1553
    %v1754 = vunpack.c.l.b16 %v1554
    %v1755 = vunpack.c.l.b16 %v1555
    %v1756 = vunpack.c.h.b16 %v1555
    %v1757 = vunpack.c.l.b16 %v1556
    %v1758 = vunpack.c.l.b16 %v1557
    %v1759 = vunpack.c.h.b16 %v1557
    %v1760 = vunpack.c.l.b16 %v1558
    %v1761 = vunpack.c.l.b16 %v1559
    %v1762 = vunpack.c.h.b16 %v1559
    %v1763 = vunpack.c.l.b16 %v1560
    %v1764 = vunpack.c.l.b16 %v1561
    %v1765 = vunpack.c.h.b16 %v1561
    %v1766 = vunpack.c.l.b16 %v1562
    %v1767 = vunpack.c.l.b16 %v1563
    %v1768 = vunpack.c.h.b16 %v1563
    %v1769 = vunpack.c.l.b16 %v1564
    %v1770 = vunpack.c.l.b16 %v1565
    %v1771 = vunpack.c.h.b16 %v1565
    %v1772 = vunpack.c.l.b16 %v1566
    %v1773 = vunpack.c.l.b16 %v1567
    %v1774 = vunpack.c.h.b16 %v1567
    %v1775 = vunpack.c.l.b16 %v1568
    %v1776 = vunpack.c.l.b16 %v1569
    %v1777 = vunpack.c.h.b16 %v1569
    %v1778 = vunpack.c.l.b16 %v1570
    %v1779 = vunpack.c.l.b16 %v1571
    %v1780 = vunpack.c.h.b16 %v1571
    %v1781 = vunpack.c.l.b16 %v1572
    %v1782 = vunpack.c.l.b16 %v1573
    %v1783 = vunpack.c.h.b16 %v1573
    %v1784 = vunpack.c.l.b16 %v1574
    %v1785 = vunpack.c.l.b16 %v1575
    %v1786 = vunpack.c.h.b16 %v1575
    %v1787 = vunpack.c.l.b16 %v1576
    %v1788 = vunpack.c.l.b16 %v1577
    %v1789 = vunpack.c.h.b16 %v1577
    %v1790 = vunpack.c.l.b16 %v1578
    %v1791 = vunpack.c.l.b16 %v1579
    %v1792 = vunpack.c.h.b16 %v1579
    %v1793 = vunpack.c.l.b16 %v1580
    %v1794 = vunpack.c.l.b16 %v1581
    %v1795 = vunpack.c.h.b16 %v1581
    %v1796 = vunpack.c.l.b16 %v1582
    %v1797 = vunpack.c.l.b16 %v1583
    %v1798 = vunpack.c.h.b16 %v1583
    %v1799 = vunpack.c.l.b16 %v1584
    %v1800 = vunpack.c.l.b16 %v1585
    %v1801 = vunpack.c.h.b16 %v1585
    %v1802 = vunpack.c.l.b16 %v1586
    %v1803 = vunpack.c.l.b16 %v1587
    %v1804 = vunpack.c.h.b16 %v1587
    %v1805 = vunpack.c.l.b16 %v1588
    %v1806 = vunpack.c.l.b16 %v1589
    %v1807 = vunpack.c.h.b16 %v1589
    %v1808 = vunpack.c.l.b16 %v1590
    %v1809 = vunpack.c.l.b16 %v1591
    %v1810 = vunpack.c.h.b16 %v1591
    %v1811 = vunpack.c.l.b16 %v1592
    %v1812 = vunpack.c.l.b16 %v1593
    %v1813 = vunpack.c.h.b16 %v1593
    %v1814 = vunpack.c.l.b16 %v1594
    %v1815 = vunpack.c.l.b16 %v1595
    %v1816 = vunpack.c.h.b16 %v1595
    %v1817 = vunpack.c.l.b16 %v1596
    %v1818 = vunpack.c.l.b16 %v1597
    %v1819 = vunpack.c.h.b16 %v1597
    %v1820 = vunpack.c.l.b16 %v1598
    %v1821 = vunpack.c.l.b16 %v1599
    %v1822 = vunpack.c.h.b16 %v1599
    %v1823 = vunpack.c.l.b16 %v1600
    %v1824 = vunpack.c.l.b16 %v1601
    %v1825 = vunpack.c.h.b16 %v1601
    %v1826 = vunpack.c.l.b16 %v1602
    %v1827 = vunpack.c.l.b16 %v1603
    %v1828 = vunpack.c.h.b16 %v1603
    %v1829 = vunpack.c.l.b16 %v1604
    %v1830 = vunpack.c.l.b16 %v1605
    %v1831 = vunpack.c.h.b16 %v1605
    %v1832 = vunpack.c.l.b16 %v1606
    %v1833 = vunpack.c.l.b16 %v1607
    %v1834 = vunpack.c.h.b16 %v1607
    %v1835 = vunpack.c.l.b16 %v1608
    %v1836 = vunpack.c.l.b16 %v1609
    %v1837 = vunpack.c.h.b16 %v1609
    %v1838 = vunpack.c.l.b16 %v1610
    %v1839 = vunpack.c.l.b16 %v1611
    %v1840 = vunpack.c.h.b16 %v1611
    %v1841 = vunpack.c.l.b16 %v1612
    %v1842 = vunpack.c.l.b16 %v1613
    %v1843 = vunpack.c.h.b16 %v1613
    %v1844 = vunpack.c.l.b16 %v1614
    %v1845 = vunpack.c.l.b16 %v1615
    %v1846 = vunpack.c.h.b16 %v1615
    %v1847 = vunpack.c.l.b16 %v1616
    %v1848 = vunpack.c.l.b16 %v1617
    %v1849 = vunpack.c.h.b16 %v1617
    %v1850 = vunpack.c.l.b16 %v1618
    %v1851 = vunpack.c.l.b16 %v1619
    %v1852 = vunpack.c.h.b16 %v1619
    %v1853 = vunpack.c.l.b16 %v1620
    %v1854 = vunpack.c.l.b16 %v1621
    %v1855 = vunpack.c.h.b16 %v1621
    %v1856 = vunpack.c.l.b16 %v1622
    %v1857 = vunpack.c.l.b16 %v1623
    %v1858 = vunpack.c.h.b16 %v1623
    %v1859 = vunpack.c.l.b16 %v1624
    %v1860 = vunpack.c.l.b16 %v1625
    %v1861 = vunpack.c.h.b16 %v1625
    %v1862 = vunpack.c.l.b16 %v1626
    %v1863 = vunpack.c.l.b16 %v1627
    %v1864 = vunpack.c.h.b16 %v1627
    %v1865 = vunpack.c.l.b16 %v1628
    %v1866 = vunpack.c.l.b16 %v1629
    %v1867 = vunpack.c.h.b16 %v1629
    %v1868 = vunpack.c.l.b16 %v1630
    %v1869 = vunpack.c.l.b16 %v1631
    %v1870 = vunpack.c.h.b16 %v1631
    %v1871 = vunpack.c.l.b16 %v1632
    %v1872 = vunpack.c.l.b16 %v1633
    %v1873 = vunpack.c.h.b16 %v1633
    %v1874 = vunpack.c.l.b16 %v1634
    %v1875 = vpack.c.b16 %v1734, %v1731
    %v1876 = vpack.c.b16 %v1735, %v1732
    %v1877 = vpack.c.b16 %v1736, %v1733
    %v1878 = vpack.c.b16 %v1740, %v1737
    %v1879 = vpack.c.b16 %v1741, %v1738
    %v1880 = vpack.c.b16 %v1742, %v1739
    %v1881 = vpack.c.b16 %v1746, %v1743
    %v1882 = vpack.c.b16 %v1747, %v1744
    %v1883 = vpack.c.b16 %v1748, %v1745
    %v1884 = vpack.c.b16 %v1752, %v1749
    %v1885 = vpack.c.b16 %v1753, %v1750
    %v1886 = vpack.c.b16 %v1754, %v1751
    %v1887 = vpack.c.b16 %v1758, %v1755
    %v1888 = vpack.c.b16 %v1759, %v1756
    %v1889 = vpack.c.b16 %v1760, %v1757
    %v1890 = vpack.c.b16 %v1764, %v1761
    %v1891 = vpack.c.b16 %v1765, %v1762
    %v1892 = vpack.c.b16 %v1766, %v1763
    %v1893 = vpack.c.b16 %v1770, %v1767
    %v1894 = vpack.c.b16 %v1771, %v1768
    %v1895 = vpack.c.b16 %v1772, %v1769
    %v1896 = vpack.c.b16 %v1776, %v1773
    %v1897 = vpack.c.b16 %v1777, %v1774
    %v1898 = vpack.c.b16 %v1778, %v1775
    %v1899 = vpack.c.b16 %v1782, %v1779
    %v1900 = vpack.c.b16 %v1783, %v1780
    %v1901 = vpack.c.b16 %v1784, %v1781
    %v1902 = vpack.c.b16 %v1788, %v1785
    %v1903 = vpack.c.b16 %v1789, %v1786
    %v1904 = vpack.c.b16 %v1790, %v1787
    %v1905 = vpack.c.b16 %v1794, %v1791
    %v1906 = vpack.c.b16 %v1795, %v1792
    %v1907 = vpack.c.b16 %v1796, %v1793
    %v1908 = vpack.c.b16 %v1800, %v1797
    %v1909 = vpack.c.b16 %v1801, %v1798
    %v1910 = vpack.c.b16 %v1802, %v1799
    %v1911 = vpack.c.b16 %v1806, %v1803
    %v1912 = vpack.c.b16 %v1807, %v1804
    %v1913 = vpack.c.b16 %v1808, %v1805
    %v1914 = vpack.c.b16 %v1812, %v1809
    %v1915 = vpack.c.b16 %v1813, %v1810
    %v1916 = vpack.c.b16 %v1814, %v1811
    %v1917 = vpack.c.b16 %v1818, %v1815
    %v1918 = vpack.c.b16 %v1819, %v1816
    %v1919 = vpack.c.b16 %v1820, %v1817
    %v1920 = vpack.c.b16 %v1824, %v1821
    %v1921 = vpack.c.b16 %v1825, %v1822
    %v1922 = vpack.c.b16 %v1826, %v1823
    %v1923 = vpack.c.b16 %v1830, %v1827
    %v1924 = vpack.c.b16 %v1831, %v1828
    %v1925 = vpack.c.b16 %v1832, %v1829
    %v1926 = vpack.c.b16 %v1836, %v1833
    %v1927 = vpack.c.b16 %v1837, %v1834
    %v1928 = vpack.c.b16 %v1838, %v1835
    %v1929 = vpack.c.b16 %v1842, %v1839
    %v1930 = vpack.c.b16 %v1843, %v1840
    %v1931 = vpack.c.b16 %v1844, %v1841
    %v1932 = vpack.c.b16 %v1848, %v1845
    %v1933 = vpack.c.b16 %v1849, %v1846
    %v1934 = vpack.c.b16 %v1850, %v1847
    %v1935 = vpack.c.b16 %v1854, %v1851
    %v1936 = vpack.c.b16 %v1855, %v1852
    %v1937 = vpack.c.b16 %v1856, %v1853
    %v1938 = vpack.c.b16 %v1860, %v1857
    %v1939 = vpack.c.b16 %v1861, %v1858
    %v1940 = vpack.c.b16 %v1862, %v1859
    %v1941 = vpack.c.b16 %v1866, %v1863
    %v1942 = vpack.c.b16 %v1867, %v1864
    %v1943 = vpack.c.b16 %v1868, %v1865
    %v1944 = vpack.c.b16 %v1872, %v1869
    %v1945 = vpack.c.b16 %v1873, %v1870
    %v1946 = vpack.c.b16 %v1874, %v1871
    %2019 = vmatprep.subr.bf16.mxu0 %v1876
    %2020 = vmatpush1.bf16.msra.mxu0 %v1875
    %2021 = vmatprep.subr.bf16.mxu0 %v1879
    %2022 = vmatpush1.bf16.msra.mxu0 %v1878
    %2023 = vmatprep.subr.bf16.mxu0 %v1882
    %2024 = vmatpush1.bf16.msra.mxu0 %v1881
    %2025 = vmatprep.subr.bf16.mxu0 %v1885
    %2026 = vmatpush1.bf16.msra.mxu0 %v1884
    %2027 = vmatprep.subr.bf16.mxu0 %v1888
    %2028 = vmatpush1.bf16.msra.mxu0 %v1887
    %2029 = vmatprep.subr.bf16.mxu0 %v1891
    %2030 = vmatpush1.bf16.msra.mxu0 %v1890
    %2031 = vmatprep.subr.bf16.mxu0 %v1894
    %2032 = vmatpush1.bf16.msra.mxu0 %v1893
    %2033 = vmatprep.subr.bf16.mxu0 %v1897
    %2034 = vmatpush1.bf16.msra.mxu0 %v1896
    %2035 = vmatprep.subr.bf16.mxu0 %v1900
    %2036 = vmatpush1.bf16.msra.mxu0 %v1899
    %2037 = vmatprep.subr.bf16.mxu0 %v1903
    %2038 = vmatpush1.bf16.msra.mxu0 %v1902
    %2039 = vmatprep.subr.bf16.mxu0 %v1906
    %2040 = vmatpush1.bf16.msra.mxu0 %v1905
    %2041 = vmatprep.subr.bf16.mxu0 %v1909
    %2042 = vmatpush1.bf16.msra.mxu0 %v1908
    %2043 = vmatprep.subr.bf16.mxu0 %v1912
    %2044 = vmatpush1.bf16.msra.mxu0 %v1911
    %2045 = vmatprep.subr.bf16.mxu0 %v1915
    %2046 = vmatpush1.bf16.msra.mxu0 %v1914
    %2047 = vmatprep.subr.bf16.mxu0 %v1918
    %2048 = vmatpush1.bf16.msra.mxu0 %v1917
    %2049 = vmatprep.subr.bf16.mxu0 %v1921
    %2050 = vmatpush1.bf16.msra.mxu0 %v1920
    %2051 = vmatprep.mubr.bf16.mxu0 %v1537
    %2052 = vmatmul.mubr.bf16.gmra.mrb[0].mxu0 %v1536
    %v2053 = vpop.f32.mrb[0].mxu0
    %v2054 = vadd.f32 0.0, %v2053
    %v2055 = vpop.f32.mrb[0].mxu0
    %v2056 = vadd.f32 0.0, %v2055
    %v2057 = vpop.f32.mrb[0].mxu0
    %v2058 = vadd.f32 0.0, %v2057
    %v2059 = vpop.f32.mrb[0].mxu0
    %v2060 = vadd.f32 0.0, %v2059
    %2061 = vdwg.mxu0
    %2062 = vmatprep.subr.bf16.mxu0 %v1924
    %2063 = vmatpush1.bf16.msra.mxu0 %v1923
    %2064 = vmatprep.subr.bf16.mxu0 %v1927
    %2065 = vmatpush1.bf16.msra.mxu0 %v1926
    %2066 = vmatprep.subr.bf16.mxu0 %v1930
    %2067 = vmatpush1.bf16.msra.mxu0 %v1929
    %2068 = vmatprep.subr.bf16.mxu0 %v1933
    %2069 = vmatpush1.bf16.msra.mxu0 %v1932
    %2070 = vmatprep.subr.bf16.mxu0 %v1936
    %2071 = vmatpush1.bf16.msra.mxu0 %v1935
    %2072 = vmatprep.subr.bf16.mxu0 %v1939
    %2073 = vmatpush1.bf16.msra.mxu0 %v1938
    %2074 = vmatprep.subr.bf16.mxu0 %v1942
    %2075 = vmatpush1.bf16.msra.mxu0 %v1941
    %2076 = vmatprep.subr.bf16.mxu0 %v1945
    %2077 = vmatpush1.bf16.msra.mxu0 %v1944
    %2078 = vmatprep.subr.bf16.mxu0 0
    %2079 = vmatpush1.bf16.msra.mxu0 0
    %2080 = vmatprep.subr.bf16.mxu0 0
    %2081 = vmatpush1.bf16.msra.mxu0 0
    %2082 = vmatprep.subr.bf16.mxu0 0
    %2083 = vmatpush1.bf16.msra.mxu0 0
    %2084 = vmatprep.subr.bf16.mxu0 0
    %2085 = vmatpush1.bf16.msra.mxu0 0
    %2086 = vmatprep.subr.bf16.mxu0 0
    %2087 = vmatpush1.bf16.msra.mxu0 0
    %2088 = vmatprep.subr.bf16.mxu0 0
    %2089 = vmatpush1.bf16.msra.mxu0 0
    %2090 = vmatprep.subr.bf16.mxu0 0
    %2091 = vmatpush1.bf16.msra.mxu0 0
    %2092 = vmatprep.subr.bf16.mxu0 0
    %2093 = vmatpush1.bf16.msra.mxu0 0
    %2094 = vmatprep.mubr.bf16.mxu0 0
    %2095 = vmatmul.mubr.bf16.gmra.mrb[0].mxu0 %v1538
    %v2096 = vpop.f32.mrb[0].mxu0
    %v2097 = vadd.f32 %v2054, %v2096
    %v2098 = vpop.f32.mrb[0].mxu0
    %v2099 = vadd.f32 %v2056, %v2098
    %v2100 = vpop.f32.mrb[0].mxu0
    %v2101 = vadd.f32 %v2058, %v2100
    %v2102 = vpop.f32.mrb[0].mxu0
    %v2103 = vadd.f32 %v2060, %v2102
    %2104 = vdwg.mxu0
    %2105 = vmatprep.subr.bf16.mxu0 0
    %2106 = vmatpush1.bf16.msra.mxu0 %v1877
    %2107 = vmatprep.subr.bf16.mxu0 0
    %2108 = vmatpush1.bf16.msra.mxu0 %v1880
    %2109 = vmatprep.subr.bf16.mxu0 0
    %2110 = vmatpush1.bf16.msra.mxu0 %v1883
    %2111 = vmatprep.subr.bf16.mxu0 0
    %2112 = vmatpush1.bf16.msra.mxu0 %v1886
    %2113 = vmatprep.subr.bf16.mxu0 0
    %2114 = vmatpush1.bf16.msra.mxu0 %v1889
    %2115 = vmatprep.subr.bf16.mxu0 0
    %2116 = vmatpush1.bf16.msra.mxu0 %v1892
    %2117 = vmatprep.subr.bf16.mxu0 0
    %2118 = vmatpush1.bf16.msra.mxu0 %v1895
    %2119 = vmatprep.subr.bf16.mxu0 0
    %2120 = vmatpush1.bf16.msra.mxu0 %v1898
    %2121 = vmatprep.subr.bf16.mxu0 0
    %2122 = vmatpush1.bf16.msra.mxu0 %v1901
    %2123 = vmatprep.subr.bf16.mxu0 0
    %2124 = vmatpush1.bf16.msra.mxu0 %v1904
    %2125 = vmatprep.subr.bf16.mxu0 0
    %2126 = vmatpush1.bf16.msra.mxu0 %v1907
    %2127 = vmatprep.subr.bf16.mxu0 0
    %2128 = vmatpush1.bf16.msra.mxu0 %v1910
    %2129 = vmatprep.subr.bf16.mxu0 0
    %2130 = vmatpush1.bf16.msra.mxu0 %v1913
    %2131 = vmatprep.subr.bf16.mxu0 0
    %2132 = vmatpush1.bf16.msra.mxu0 %v1916
    %2133 = vmatprep.subr.bf16.mxu0 0
    %2134 = vmatpush1.bf16.msra.mxu0 %v1919
    %2135 = vmatprep.subr.bf16.mxu0 0
    %2136 = vmatpush1.bf16.msra.mxu0 %v1922
    %2137 = vmatprep.mubr.bf16.mxu0 %v1537
    %2138 = vmatmul.mubr.bf16.gmra.mrb[0].mxu0 %v1536
    %v2139 = vpop.f32.mrb[0].mxu0
    %v2140 = vadd.f32 0.0, %v2139
    %v2141 = vpop.f32.mrb[0].mxu0
    %v2142 = vpop.f32.mrb[0].mxu0
    %v2143 = vadd.f32 0.0, %v2142
    %v2144 = vpop.f32.mrb[0].mxu0
    %2145 = vdwg.mxu0
    %2146 = vmatprep.subr.bf16.mxu0 0
    %2147 = vmatpush1.bf16.msra.mxu0 %v1925
    %2148 = vmatprep.subr.bf16.mxu0 0
    %2149 = vmatpush1.bf16.msra.mxu0 %v1928
    %2150 = vmatprep.subr.bf16.mxu0 0
    %2151 = vmatpush1.bf16.msra.mxu0 %v1931
    %2152 = vmatprep.subr.bf16.mxu0 0
    %2153 = vmatpush1.bf16.msra.mxu0 %v1934
    %2154 = vmatprep.subr.bf16.mxu0 0
    %2155 = vmatpush1.bf16.msra.mxu0 %v1937
    %2156 = vmatprep.subr.bf16.mxu0 0
    %2157 = vmatpush1.bf16.msra.mxu0 %v1940
    %2158 = vmatprep.subr.bf16.mxu0 0
    %2159 = vmatpush1.bf16.msra.mxu0 %v1943
    %2160 = vmatprep.subr.bf16.mxu0 0
    %2161 = vmatpush1.bf16.msra.mxu0 %v1946
    %2162 = vmatprep.subr.bf16.mxu0 0
    %2163 = vmatpush1.bf16.msra.mxu0 0
    %2164 = vmatprep.subr.bf16.mxu0 0
    %2165 = vmatpush1.bf16.msra.mxu0 0
    %2166 = vmatprep.subr.bf16.mxu0 0
    %2167 = vmatpush1.bf16.msra.mxu0 0
    %2168 = vmatprep.subr.bf16.mxu0 0
    %2169 = vmatpush1.bf16.msra.mxu0 0
    %2170 = vmatprep.subr.bf16.mxu0 0
    %2171 = vmatpush1.bf16.msra.mxu0 0
    %2172 = vmatprep.subr.bf16.mxu0 0
    %2173 = vmatpush1.bf16.msra.mxu0 0
    %2174 = vmatprep.subr.bf16.mxu0 0
    %2175 = vmatpush1.bf16.msra.mxu0 0
    %2176 = vmatprep.subr.bf16.mxu0 0
    %2177 = vmatpush1.bf16.msra.mxu0 0
    %2178 = vmatprep.mubr.bf16.mxu0 0
    %2179 = vmatmul.mubr.bf16.gmra.mrb[0].mxu0 %v1538
    %v2180 = vpop.f32.mrb[0].mxu0
    %v2181 = vadd.f32 %v2140, %v2180
    %v2182 = vpop.f32.mrb[0].mxu0
    %v2183 = vpop.f32.mrb[0].mxu0
    %v2184 = vadd.f32 %v2143, %v2183
    %v2185 = vpop.f32.mrb[0].mxu0
    %2186 = vdwg.mxu0
    %v2187 = vmul.f32 %v2097, %v1487
    %v2188 = vmul.f32 %v2099, %v1489
    %v2189 = vmul.f32 %v2181, %v1530
    %v2190 = vmul.f32 %v2101, %v1491
    %v2191 = vmul.f32 %v2103, %v1493
    %v2192 = vmul.f32 %v2184, %v1533
    %v2193 = vadd.f32 %v2187, %v2097
    %v2194 = vadd.f32 %v2188, %v2099
    %v2195 = vadd.f32 %v2189, %v2181
    %v2196 = vadd.f32 %v2190, %v2101
    %v2197 = vadd.f32 %v2191, %v2103
    %v2198 = vadd.f32 %v2192, %v2184
    %v2199 = vpack.c.bf16 %v2196, %v2193
    %v2200 = vpack.c.bf16 %v2197, %v2194
    %v2201 = vpack.c.bf16 %v2198, %v2195
    %v2202 = vld [vmem:[%s6] sm:$0xf]
    %v2203 = vld [vmem:[%s6 + $0x4] sm:$0xf]
    %v2204 = vld [vmem:[%s6 + $0x8] sm:$0xf]
    %v2205 = vld [vmem:[%s6 + $0xc] sm:$0xf]
    %v2206 = vld [vmem:[%s6 + $0x10] sm:$0xf]
    %v2207 = vld [vmem:[%s6 + $0x14] sm:$0xf]
    %v2208 = vld [vmem:[%s6 + $0x18] sm:$0xf]
    %v2209 = vld [vmem:[%s6 + $0x1c] sm:$0xf]
    %v2210 = vld [vmem:[%s6 + $0x20] sm:$0xf]
    %v2211 = vld [vmem:[%s6 + $0x24] sm:$0xf]
    %v2212 = vld [vmem:[%s6 + $0x28] sm:$0xf]
    %v2213 = vld [vmem:[%s6 + $0x2c] sm:$0xf]
    %v2214 = vld [vmem:[%s6 + $0x30] sm:$0xf]
    %v2215 = vld [vmem:[%s6 + $0x34] sm:$0xf]
    %v2216 = vld [vmem:[%s6 + $0x38] sm:$0xf]
    %v2217 = vld [vmem:[%s6 + $0x3c] sm:$0xf]
    %v2218 = vld [vmem:[%s6 + $0x40] sm:$0xf]
    %v2219 = vld [vmem:[%s6 + $0x44] sm:$0xf]
    %v2220 = vld [vmem:[%s6 + $0x48] sm:$0xf]
    %v2221 = vld [vmem:[%s6 + $0x4c] sm:$0xf]
    %v2222 = vld [vmem:[%s6 + $0x50] sm:$0xf]
    %v2223 = vld [vmem:[%s6 + $0x54] sm:$0xf]
    %v2224 = vld [vmem:[%s6 + $0x58] sm:$0xf]
    %v2225 = vld [vmem:[%s6 + $0x5c] sm:$0xf]
    %v2226 = vld [vmem:[%s6 + $0x60] sm:$0xf]
    %v2227 = vld [vmem:[%s6 + $0x64] sm:$0xf]
    %v2228 = vld [vmem:[%s6 + $0x68] sm:$0xf]
    %v2229 = vld [vmem:[%s6 + $0x6c] sm:$0xf]
    %v2230 = vld [vmem:[%s6 + $0x70] sm:$0xf]
    %v2231 = vld [vmem:[%s6 + $0x74] sm:$0xf]
    %v2232 = vld [vmem:[%s6 + $0x78] sm:$0xf]
    %v2233 = vld [vmem:[%s6 + $0x7c] sm:$0xf]
    %v2234 = vld [vmem:[%s6 + $0x80] sm:$0xf]
    %v2235 = vld [vmem:[%s6 + $0x84] sm:$0xf]
    %v2236 = vld [vmem:[%s6 + $0x88] sm:$0xf]
    %v2237 = vld [vmem:[%s6 + $0x8c] sm:$0xf]
    %v2238 = vld [vmem:[%s6 + $0x90] sm:$0xf]
    %v2239 = vld [vmem:[%s6 + $0x94] sm:$0xf]
    %v2240 = vld [vmem:[%s6 + $0x98] sm:$0xf]
    %v2241 = vld [vmem:[%s6 + $0x9c] sm:$0xf]
    %v2242 = vld [vmem:[%s6 + $0xa0] sm:$0xf]
    %v2243 = vld [vmem:[%s6 + $0xa4] sm:$0xf]
    %v2244 = vld [vmem:[%s6 + $0xa8] sm:$0xf]
    %v2245 = vld [vmem:[%s6 + $0xac] sm:$0xf]
    %v2246 = vld [vmem:[%s6 + $0xb0] sm:$0xf]
    %v2247 = vld [vmem:[%s6 + $0xb4] sm:$0xf]
    %v2248 = vld [vmem:[%s6 + $0xb8] sm:$0xf]
    %v2249 = vld [vmem:[%s6 + $0xbc] sm:$0xf]
    %v2298 = vunpack.c.l.b16 %v2202
    %v2299 = vunpack.c.l.b16 %v2203
    %v2300 = vunpack.c.l.b16 %v2204
    %v2301 = vunpack.c.l.b16 %v2205
    %v2302 = vunpack.c.l.b16 %v2206
    %v2303 = vunpack.c.l.b16 %v2207
    %v2304 = vunpack.c.l.b16 %v2208
    %v2305 = vunpack.c.l.b16 %v2209
    %v2306 = vunpack.c.l.b16 %v2210
    %v2307 = vunpack.c.l.b16 %v2211
    %v2308 = vunpack.c.l.b16 %v2212
    %v2309 = vunpack.c.l.b16 %v2213
    %v2310 = vunpack.c.l.b16 %v2214
    %v2311 = vunpack.c.l.b16 %v2215
    %v2312 = vunpack.c.l.b16 %v2216
    %v2313 = vunpack.c.l.b16 %v2217
    %v2314 = vunpack.c.l.b16 %v2218
    %v2315 = vunpack.c.l.b16 %v2219
    %v2316 = vunpack.c.l.b16 %v2220
    %v2317 = vunpack.c.l.b16 %v2221
    %v2318 = vunpack.c.l.b16 %v2222
    %v2319 = vunpack.c.l.b16 %v2223
    %v2320 = vunpack.c.l.b16 %v2224
    %v2321 = vunpack.c.l.b16 %v2225
    %v2322 = vunpack.c.l.b16 %v2226
    %v2323 = vunpack.c.l.b16 %v2227
    %v2324 = vunpack.c.l.b16 %v2228
    %v2325 = vunpack.c.l.b16 %v2229
    %v2326 = vunpack.c.l.b16 %v2230
    %v2327 = vunpack.c.l.b16 %v2231
    %v2328 = vunpack.c.l.b16 %v2232
    %v2329 = vunpack.c.l.b16 %v2233
    %v2330 = vunpack.c.l.b16 %v2234
    %v2331 = vunpack.c.l.b16 %v2235
    %v2332 = vunpack.c.l.b16 %v2236
    %v2333 = vunpack.c.l.b16 %v2237
    %v2334 = vunpack.c.l.b16 %v2238
    %v2335 = vunpack.c.l.b16 %v2239
    %v2336 = vunpack.c.l.b16 %v2240
    %v2337 = vunpack.c.l.b16 %v2241
    %v2338 = vunpack.c.l.b16 %v2242
    %v2339 = vunpack.c.l.b16 %v2243
    %v2340 = vunpack.c.l.b16 %v2244
    %v2341 = vunpack.c.l.b16 %v2245
    %v2342 = vunpack.c.l.b16 %v2246
    %v2343 = vunpack.c.l.b16 %v2247
    %v2344 = vunpack.c.l.b16 %v2248
    %v2345 = vunpack.c.l.b16 %v2249
    %v2346 = vpack.c.b16 %v2299, %v2298
    %v2347 = vpack.c.b16 %v2301, %v2300
    %v2348 = vpack.c.b16 %v2303, %v2302
    %v2349 = vpack.c.b16 %v2305, %v2304
    %v2350 = vpack.c.b16 %v2307, %v2306
    %v2351 = vpack.c.b16 %v2309, %v2308
    %v2352 = vpack.c.b16 %v2311, %v2310
    %v2353 = vpack.c.b16 %v2313, %v2312
    %v2354 = vpack.c.b16 %v2315, %v2314
    %v2355 = vpack.c.b16 %v2317, %v2316
    %v2356 = vpack.c.b16 %v2319, %v2318
    %v2357 = vpack.c.b16 %v2321, %v2320
    %v2358 = vpack.c.b16 %v2323, %v2322
    %v2359 = vpack.c.b16 %v2325, %v2324
    %v2360 = vpack.c.b16 %v2327, %v2326
    %v2361 = vpack.c.b16 %v2329, %v2328
    %v2362 = vpack.c.b16 %v2331, %v2330
    %v2363 = vpack.c.b16 %v2333, %v2332
    %v2364 = vpack.c.b16 %v2335, %v2334
    %v2365 = vpack.c.b16 %v2337, %v2336
    %v2366 = vpack.c.b16 %v2339, %v2338
    %v2367 = vpack.c.b16 %v2341, %v2340
    %v2368 = vpack.c.b16 %v2343, %v2342
    %v2369 = vpack.c.b16 %v2345, %v2344
    %2394 = vmatprep.subr.bf16.mxu0 0
    %2395 = vmatpush1.bf16.msra.mxu0 %v2346
    %2396 = vmatprep.subr.bf16.mxu0 0
    %2397 = vmatpush1.bf16.msra.mxu0 %v2347
    %2398 = vmatprep.subr.bf16.mxu0 0
    %2399 = vmatpush1.bf16.msra.mxu0 %v2348
    %2400 = vmatprep.subr.bf16.mxu0 0
    %2401 = vmatpush1.bf16.msra.mxu0 %v2349
    %2402 = vmatprep.subr.bf16.mxu0 0
    %2403 = vmatpush1.bf16.msra.mxu0 %v2350
    %2404 = vmatprep.subr.bf16.mxu0 0
    %2405 = vmatpush1.bf16.msra.mxu0 %v2351
    %2406 = vmatprep.subr.bf16.mxu0 0
    %2407 = vmatpush1.bf16.msra.mxu0 %v2352
    %2408 = vmatprep.subr.bf16.mxu0 0
    %2409 = vmatpush1.bf16.msra.mxu0 %v2353
    %2410 = vmatprep.subr.bf16.mxu0 0
    %2411 = vmatpush1.bf16.msra.mxu0 %v2354
    %2412 = vmatprep.subr.bf16.mxu0 0
    %2413 = vmatpush1.bf16.msra.mxu0 %v2355
    %2414 = vmatprep.subr.bf16.mxu0 0
    %2415 = vmatpush1.bf16.msra.mxu0 %v2356
    %2416 = vmatprep.subr.bf16.mxu0 0
    %2417 = vmatpush1.bf16.msra.mxu0 %v2357
    %2418 = vmatprep.subr.bf16.mxu0 0
    %2419 = vmatpush1.bf16.msra.mxu0 %v2358
    %2420 = vmatprep.subr.bf16.mxu0 0
    %2421 = vmatpush1.bf16.msra.mxu0 %v2359
    %2422 = vmatprep.subr.bf16.mxu0 0
    %2423 = vmatpush1.bf16.msra.mxu0 %v2360
    %2424 = vmatprep.subr.bf16.mxu0 0
    %2425 = vmatpush1.bf16.msra.mxu0 %v2361
    %2426 = vmatprep.mubr.bf16.mxu0 %v2200
    %2427 = vmatmul.mubr.bf16.gmra.mrb[0].mxu0 %v2199
    %v2428 = vpop.f32.mrb[0].mxu0
    %v2429 = vadd.f32 0.0, %v2428
    %v2430 = vpop.f32.mrb[0].mxu0
    %v2431 = vpop.f32.mrb[0].mxu0
    %v2432 = vadd.f32 0.0, %v2431
    %v2433 = vpop.f32.mrb[0].mxu0
    %2434 = vdwg.mxu0
    %2435 = vmatprep.subr.bf16.mxu0 0
    %2436 = vmatpush1.bf16.msra.mxu0 %v2362
    %2437 = vmatprep.subr.bf16.mxu0 0
    %2438 = vmatpush1.bf16.msra.mxu0 %v2363
    %2439 = vmatprep.subr.bf16.mxu0 0
    %2440 = vmatpush1.bf16.msra.mxu0 %v2364
    %2441 = vmatprep.subr.bf16.mxu0 0
    %2442 = vmatpush1.bf16.msra.mxu0 %v2365
    %2443 = vmatprep.subr.bf16.mxu0 0
    %2444 = vmatpush1.bf16.msra.mxu0 %v2366
    %2445 = vmatprep.subr.bf16.mxu0 0
    %2446 = vmatpush1.bf16.msra.mxu0 %v2367
    %2447 = vmatprep.subr.bf16.mxu0 0
    %2448 = vmatpush1.bf16.msra.mxu0 %v2368
    %2449 = vmatprep.subr.bf16.mxu0 0
    %2450 = vmatpush1.bf16.msra.mxu0 %v2369
    %2451 = vmatprep.subr.bf16.mxu0 0
    %2452 = vmatpush1.bf16.msra.mxu0 0
    %2453 = vmatprep.subr.bf16.mxu0 0
    %2454 = vmatpush1.bf16.msra.mxu0 0
    %2455 = vmatprep.subr.bf16.mxu0 0
    %2456 = vmatpush1.bf16.msra.mxu0 0
    %2457 = vmatprep.subr.bf16.mxu0 0
    %2458 = vmatpush1.bf16.msra.mxu0 0
    %2459 = vmatprep.subr.bf16.mxu0 0
    %2460 = vmatpush1.bf16.msra.mxu0 0
    %2461 = vmatprep.subr.bf16.mxu0 0
    %2462 = vmatpush1.bf16.msra.mxu0 0
    %2463 = vmatprep.subr.bf16.mxu0 0
    %2464 = vmatpush1.bf16.msra.mxu0 0
    %2465 = vmatprep.subr.bf16.mxu0 0
    %2466 = vmatpush1.bf16.msra.mxu0 0
    %2467 = vmatprep.mubr.bf16.mxu0 0
    %2468 = vmatmul.mubr.bf16.gmra.mrb[0].mxu0 %v2201
    %v2469 = vpop.f32.mrb[0].mxu0
    %v2470 = vadd.f32 %v2429, %v2469
    %v2471 = vpop.f32.mrb[0].mxu0
    %v2472 = vpop.f32.mrb[0].mxu0
    %v2473 = vadd.f32 %v2432, %v2472
    %v2474 = vpop.f32.mrb[0].mxu0
    %2475 = vdwg.mxu0
    %vm2476 = vcmask 244736
    %v2477 = vsel %vm2476, %v2470, -inf
    %v2478 = vrot.slane %v2477, 4
    %v2479 = vmax.f32 %v2477, %v2478
    %v2480 = vrot.slane %v2479, 2
    %v2481 = vmax.f32 %v2479, %v2480
    %v2482 = vrot.slane %v2481, 1
    %v2483 = vmax.f32 %v2481, %v2482
    %v2484 = vsel %vm2476, %v2473, -inf
    %v2485 = vrot.slane %v2484, 4
    %v2486 = vmax.f32 %v2484, %v2485
    %v2487 = vrot.slane %v2486, 2
    %v2488 = vmax.f32 %v2486, %v2487
    %v2489 = vrot.slane %v2488, 1
    %v2490 = vmax.f32 %v2488, %v2489
    %v2491 = vsub.f32 %v2470, %v2483
    %v2492 = vsub.f32 %v2473, %v2490
    %v2493 = vmul.f32 %v2491, 1.442695
    %v2494 = vpow.pop %v2493
    %v2495 = vmul.f32 %v2492, 1.442695
    %v2496 = vpow.pop %v2495
    %v2497 = vsel %vm2476, %v2494, 0.0
    %v2498 = vrot.slane %v2497, 4
    %v2499 = vadd.f32 %v2497, %v2498
    %v2500 = vrot.slane %v2499, 2
    %v2501 = vadd.f32 %v2499, %v2500
    %v2502 = vrot.slane %v2501, 1
    %v2503 = vadd.f32 %v2501, %v2502
    %v2504 = vsel %vm2476, %v2496, 0.0
    %v2505 = vrot.slane %v2504, 4
    %v2506 = vadd.f32 %v2504, %v2505
    %v2507 = vrot.slane %v2506, 2
    %v2508 = vadd.f32 %v2506, %v2507
    %v2509 = vrot.slane %v2508, 1
    %v2510 = vadd.f32 %v2508, %v2509
    %v2511 = vrcp.pop %v2503
    %v2512 = vrcp.pop %v2510
    %v2513 = vmul.f32 %v2494, %v2511
    %v2514 = vmul.f32 %v2496, %v2512
    %v2515 = vld [vmem:[%s7] sm:$0xf]
    %v2516 = vld [vmem:[%s7 + $0x4] sm:$0xf]
    %v2517 = vld [vmem:[%s7 + $0x8] sm:$0xf]
    %v2518 = vld [vmem:[%s7 + $0xc] sm:$0xf]
    %v2519 = vld [vmem:[%s7 + $0x10] sm:$0xf]
    %v2520 = vld [vmem:[%s7 + $0x14] sm:$0xf]
    %v2521 = vld [vmem:[%s7 + $0x18] sm:$0xf]
    %v2522 = vld [vmem:[%s7 + $0x1c] sm:$0xf]
    %v2531 = vunpack.c.l.b16 %v2515
    %v2532 = vunpack.c.l.b16 %v2516
    %v2533 = vunpack.c.l.b16 %v2517
    %v2534 = vunpack.c.l.b16 %v2518
    %v2535 = vunpack.c.l.b16 %v2519
    %v2536 = vunpack.c.l.b16 %v2520
    %v2537 = vunpack.c.l.b16 %v2521
    %v2538 = vunpack.c.l.b16 %v2522
    %v2539 = vpack.c.b16 %v2532, %v2531
    %v2540 = vpack.c.b16 %v2534, %v2533
    %v2541 = vpack.c.b16 %v2536, %v2535
    %v2542 = vpack.c.b16 %v2538, %v2537
    %2547 = vmatprep.subr.bf16.mxu0 0
    %2548 = vmatpush1.bf16.msra.mxu0 %v2539
    %2549 = vmatprep.subr.bf16.mxu0 0
    %2550 = vmatpush1.bf16.msra.mxu0 %v2540
    %2551 = vmatprep.subr.bf16.mxu0 0
    %2552 = vmatpush1.bf16.msra.mxu0 %v2541
    %2553 = vmatprep.subr.bf16.mxu0 0
    %2554 = vmatpush1.bf16.msra.mxu0 %v2542
    %2555 = vmatprep.subr.bf16.mxu0 0
    %2556 = vmatpush1.bf16.msra.mxu0 0
    %2557 = vmatprep.subr.bf16.mxu0 0
    %2558 = vmatpush1.bf16.msra.mxu0 0
    %2559 = vmatprep.subr.bf16.mxu0 0
    %2560 = vmatpush1.bf16.msra.mxu0 0
    %2561 = vmatprep.subr.bf16.mxu0 0
    %2562 = vmatpush1.bf16.msra.mxu0 0
    %2563 = vmatprep.subr.bf16.mxu0 0
    %2564 = vmatpush1.bf16.msra.mxu0 0
    %2565 = vmatprep.subr.bf16.mxu0 0
    %2566 = vmatpush1.bf16.msra.mxu0 0
    %2567 = vmatprep.subr.bf16.mxu0 0
    %2568 = vmatpush1.bf16.msra.mxu0 0
    %2569 = vmatprep.subr.bf16.mxu0 0
    %2570 = vmatpush1.bf16.msra.mxu0 0
    %2571 = vmatprep.subr.bf16.mxu0 0
    %2572 = vmatpush1.bf16.msra.mxu0 0
    %2573 = vmatprep.subr.bf16.mxu0 0
    %2574 = vmatpush1.bf16.msra.mxu0 0
    %2575 = vmatprep.subr.bf16.mxu0 0
    %2576 = vmatpush1.bf16.msra.mxu0 0
    %2577 = vmatprep.subr.bf16.mxu0 0
    %2578 = vmatpush1.bf16.msra.mxu0 0
    %2579 = vmatprep.mubr.bf16.mxu0 0
    %2580 = vmatmul.mubr.bf16.gmra.mrb[0].mxu0 %v1450
    %v2581 = vpop.f32.mrb[0].mxu0
    %v2582 = vadd.f32 0.0, %v2581
    %v2583 = vpop.f32.mrb[0].mxu0
    %v2584 = vpop.f32.mrb[0].mxu0
    %v2585 = vadd.f32 0.0, %v2584
    %v2586 = vpop.f32.mrb[0].mxu0
    %2587 = vdwg.mxu0
    %v2588 = vld [vmem:[%s8] sm:$0xff]
    %v2589 = vld [vmem:[%s8 + $0x8] sm:$0xff]
    %v2590 = vld [vmem:[%s8 + $0x10] sm:$0xff]
    %v2591 = vld [vmem:[%s8 + $0x18] sm:$0x3f]
    %v2593 = vsel %vm2476, %v2513, 0
    %v2596 = vsel %vm2476, %v2514, 0
    %v2599 = vsel %vm1319, %v2591, 0
    %2601 = vmatprep.subr.mxu0 0.0
    %2602 = vmatpush1.msra.mxu0 %v2588
    %2603 = vmatprep.subr.mxu0 0.0
    %2604 = vmatpush1.msra.mxu0 %v2589
    %2605 = vmatprep.subr.mxu0 0.0
    %2606 = vmatpush1.msra.mxu0 %v2590
    %2607 = vmatprep.subr.mxu0 0.0
    %2608 = vmatpush1.msra.mxu0 %v2599
    %2609 = vmatprep.subr.mxu0 0.0
    %2610 = vmatpush1.msra.mxu0 0.0
    %2611 = vmatprep.subr.mxu0 0.0
    %2612 = vmatpush1.msra.mxu0 0.0
    %2613 = vmatprep.subr.mxu0 0.0
    %2614 = vmatpush1.msra.mxu0 0.0
    %2615 = vmatprep.subr.mxu0 0.0
    %2616 = vmatpush1.msra.mxu0 0.0
    %2617 = vmatprep.subr.mxu0 0.0
    %2618 = vmatpush1.msra.mxu0 0.0
    %2619 = vmatprep.subr.mxu0 0.0
    %2620 = vmatpush1.msra.mxu0 0.0
    %2621 = vmatprep.subr.mxu0 0.0
    %2622 = vmatpush1.msra.mxu0 0.0
    %2623 = vmatprep.subr.mxu0 0.0
    %2624 = vmatpush1.msra.mxu0 0.0
    %2625 = vmatprep.subr.mxu0 0.0
    %2626 = vmatpush1.msra.mxu0 0.0
    %2627 = vmatprep.subr.mxu0 0.0
    %2628 = vmatpush1.msra.mxu0 0.0
    %2629 = vmatprep.subr.mxu0 0.0
    %2630 = vmatpush1.msra.mxu0 0.0
    %2631 = vmatprep.subr.mxu0 0.0
    %2632 = vmatpush1.msra.mxu0 0.0
    %2633 = vmatprep.subr.mxu0 0.0
    %2634 = vmatpush1.msra.mxu0 0.0
    %2635 = vmatprep.subr.mxu0 0.0
    %2636 = vmatpush1.msra.mxu0 0.0
    %2637 = vmatprep.subr.mxu0 0.0
    %2638 = vmatpush1.msra.mxu0 0.0
    %2639 = vmatprep.subr.mxu0 0.0
    %2640 = vmatpush1.msra.mxu0 0.0
    %2641 = vmatprep.subr.mxu0 0.0
    %2642 = vmatpush1.msra.mxu0 0.0
    %2643 = vmatprep.subr.mxu0 0.0
    %2644 = vmatpush1.msra.mxu0 0.0
    %2645 = vmatprep.subr.mxu0 0.0
    %2646 = vmatpush1.msra.mxu0 0.0
    %2647 = vmatprep.subr.mxu0 0.0
    %2648 = vmatpush1.msra.mxu0 0.0
    %2649 = vmatprep.subr.mxu0 0.0
    %2650 = vmatpush1.msra.mxu0 0.0
    %2651 = vmatprep.subr.mxu0 0.0
    %2652 = vmatpush1.msra.mxu0 0.0
    %2653 = vmatprep.subr.mxu0 0.0
    %2654 = vmatpush1.msra.mxu0 0.0
    %2655 = vmatprep.subr.mxu0 0.0
    %2656 = vmatpush1.msra.mxu0 0.0
    %2657 = vmatprep.subr.mxu0 0.0
    %2658 = vmatpush1.msra.mxu0 0.0
    %2659 = vmatprep.subr.mxu0 0.0
    %2660 = vmatpush1.msra.mxu0 0.0
    %2661 = vmatprep.subr.mxu0 0.0
    %2662 = vmatpush1.msra.mxu0 0.0
    %2663 = vmatprep.subr.mxu0 0.0
    %2664 = vmatpush1.msra.mxu0 0.0
    %2665 = vmatprep.mubr.f32.mxu0 0.0
    %2666 = vmatmul.mubr.f32.gmra.mrb[0].mxu0 %v2593
    %v2667 = vpop.f32.mrb[0].mxu0
    %v2668 = vadd.f32 0.0, %v2667
    %v2669 = vpop.f32.mrb[0].mxu0
    %2670 = vmatprep.mubr.f32.mxu0 0.0
    %2671 = vmatmul.mubr.f32.gmra.mrb[0].mxu0 %v2596
    %v2672 = vpop.f32.mrb[0].mxu0
    %v2673 = vadd.f32 0.0, %v2672
    %v2674 = vpop.f32.mrb[0].mxu0
    %2675 = vdwg.mxu0
    %v2676 = vmul.f32 %v2668, %v2582
    %v2677 = vmul.f32 %v2673, %v2585
    %v2678 = vld [vmem:[%s9] sm:$0xff]
    %v2679 = vld [vmem:[%s9 + $0x8] sm:$0xff]
    %v2680 = vld [vmem:[%s9 + $0x10] sm:$0xff]
    %v2681 = vld [vmem:[%s9 + $0x18] sm:$0xff]
    %v2682 = vld [vmem:[%s9 + $0x20] sm:$0xff]
    %v2683 = vld [vmem:[%s9 + $0x28] sm:$0xff]
    %v2684 = vld [vmem:[%s9 + $0x30] sm:$0xff]
    %v2685 = vld [vmem:[%s9 + $0x38] sm:$0xff]
    %v2686 = vld [vmem:[%s9 + $0x40] sm:$0xff]
    %v2687 = vld [vmem:[%s9 + $0x48] sm:$0xff]
    %v2688 = vld [vmem:[%s9 + $0x50] sm:$0xff]
    %v2689 = vld [vmem:[%s9 + $0x58] sm:$0xff]
    %v2690 = vld [vmem:[%s9 + $0x60] sm:$0xff]
    %v2691 = vld [vmem:[%s9 + $0x68] sm:$0xff]
    %v2692 = vld [vmem:[%s9 + $0x70] sm:$0xff]
    %vm2693 = vcmask 982016
    %v2695 = vsel %vm2693, %v2676, 0
    %v2698 = vsel %vm2693, %v2677, 0
    %2700 = vmatprep.subr.mxu0 0.0
    %2701 = vmatpush1.msra.mxu0 %v2678
    %2702 = vmatprep.subr.mxu0 0.0
    %2703 = vmatpush1.msra.mxu0 %v2679
    %2704 = vmatprep.subr.mxu0 0.0
    %2705 = vmatpush1.msra.mxu0 %v2680
    %2706 = vmatprep.subr.mxu0 0.0
    %2707 = vmatpush1.msra.mxu0 %v2681
    %2708 = vmatprep.subr.mxu0 0.0
    %2709 = vmatpush1.msra.mxu0 %v2682
    %2710 = vmatprep.subr.mxu0 0.0
    %2711 = vmatpush1.msra.mxu0 %v2683
    %2712 = vmatprep.subr.mxu0 0.0
    %2713 = vmatpush1.msra.mxu0 %v2684
    %2714 = vmatprep.subr.mxu0 0.0
    %2715 = vmatpush1.msra.mxu0 %v2685
    %2716 = vmatprep.subr.mxu0 0.0
    %2717 = vmatpush1.msra.mxu0 %v2686
    %2718 = vmatprep.subr.mxu0 0.0
    %2719 = vmatpush1.msra.mxu0 %v2687
    %2720 = vmatprep.subr.mxu0 0.0
    %2721 = vmatpush1.msra.mxu0 %v2688
    %2722 = vmatprep.subr.mxu0 0.0
    %2723 = vmatpush1.msra.mxu0 %v2689
    %2724 = vmatprep.subr.mxu0 0.0
    %2725 = vmatpush1.msra.mxu0 %v2690
    %2726 = vmatprep.subr.mxu0 0.0
    %2727 = vmatpush1.msra.mxu0 %v2691
    %2728 = vmatprep.subr.mxu0 0.0
    %2729 = vmatpush1.msra.mxu0 %v2692
    %2730 = vmatprep.subr.mxu0 0.0
    %2731 = vmatpush1.msra.mxu0 0.0
    %2732 = vmatprep.subr.mxu0 0.0
    %2733 = vmatpush1.msra.mxu0 0.0
    %2734 = vmatprep.subr.mxu0 0.0
    %2735 = vmatpush1.msra.mxu0 0.0
    %2736 = vmatprep.subr.mxu0 0.0
    %2737 = vmatpush1.msra.mxu0 0.0
    %2738 = vmatprep.subr.mxu0 0.0
    %2739 = vmatpush1.msra.mxu0 0.0
    %2740 = vmatprep.subr.mxu0 0.0
    %2741 = vmatpush1.msra.mxu0 0.0
    %2742 = vmatprep.subr.mxu0 0.0
    %2743 = vmatpush1.msra.mxu0 0.0
    %2744 = vmatprep.subr.mxu0 0.0
    %2745 = vmatpush1.msra.mxu0 0.0
    %2746 = vmatprep.subr.mxu0 0.0
    %2747 = vmatpush1.msra.mxu0 0.0
    %2748 = vmatprep.subr.mxu0 0.0
    %2749 = vmatpush1.msra.mxu0 0.0
    %2750 = vmatprep.subr.mxu0 0.0
    %2751 = vmatpush1.msra.mxu0 0.0
    %2752 = vmatprep.subr.mxu0 0.0
    %2753 = vmatpush1.msra.mxu0 0.0
    %2754 = vmatprep.subr.mxu0 0.0
    %2755 = vmatpush1.msra.mxu0 0.0
    %2756 = vmatprep.subr.mxu0 0.0
    %2757 = vmatpush1.msra.mxu0 0.0
    %2758 = vmatprep.subr.mxu0 0.0
    %2759 = vmatpush1.msra.mxu0 0.0
    %2760 = vmatprep.subr.mxu0 0.0
    %2761 = vmatpush1.msra.mxu0 0.0
    %2762 = vmatprep.subr.mxu0 0.0
    %2763 = vmatpush1.msra.mxu0 0.0
    %2764 = vmatprep.mubr.f32.mxu0 0.0
    %2765 = vmatmul.mubr.f32.gmra.mrb[0].mxu0 %v2695
    %v2766 = vpop.f32.mrb[0].mxu0
    %v2767 = vadd.f32 0.0, %v2766
    %v2768 = vpop.f32.mrb[0].mxu0
    %2769 = vmatprep.mubr.f32.mxu0 0.0
    %2770 = vmatmul.mubr.f32.gmra.mrb[0].mxu0 %v2698
    %v2771 = vpop.f32.mrb[0].mxu0
    %v2772 = vadd.f32 0.0, %v2771
    %v2773 = vpop.f32.mrb[0].mxu0
    %2774 = vdwg.mxu0
    %vm2775 = vcmask 31744
    %v2776 = vsel %vm2775, %v2767, 0.0
    %v2777 = vrot.slane %v2776, 4
    %v2778 = vadd.f32 %v2776, %v2777
    %v2779 = vrot.slane %v2778, 2
    %v2780 = vadd.f32 %v2778, %v2779
    %v2781 = vrot.slane %v2780, 1
    %v2782 = vadd.f32 %v2780, %v2781
    %v2783 = vsel %vm2775, %v2772, 0.0
    %v2784 = vrot.slane %v2783, 4
    %v2785 = vadd.f32 %v2783, %v2784
    %v2786 = vrot.slane %v2785, 2
    %v2787 = vadd.f32 %v2785, %v2786
    %v2788 = vrot.slane %v2787, 1
    %v2789 = vadd.f32 %v2787, %v2788
    %vm2792 = vcmask 1041409
    %v2793 = vsel %vm2792, %v2789, %v2782
    %vm2795 = vcmask 25600
    %2796 = vst.msk [vmem:[#allocation5] sm:$0x3] %vm2795, %v2793
    // Predicated region
    $region46: #{self_dd_attn_forward.1} parent=1 // pred_check
      _
    $region47: #{self_dd_attn_forward.1} parent=1 // pred_check_branch
      %2798 = sbr.rel (0) target = $region49
    $region48: #{self_dd_attn_forward.1} parent=1 // pred_region
      %s2800 = ssub.s32 32, 32
      %2801 = vsyncadd [#allocation4], %s2800
      %s2803 = sshll.u32 [#allocation5], 4
      %s2804 = int_to_ptr.vmem [resolvable:$true] %s2803
      %2806 = dma.vmem_to_hbm [thread:$0]  %s2804, 32, %s10, [#allocation4]
    $region49: #{self_dd_attn_forward.1} parent=1 // pred_fallthru
      _
    // Predicated region
    $region50: #{self_dd_attn_forward.1} parent=1 // pred_check
      _
    $region51: #{self_dd_attn_forward.1} parent=1 // pred_check_branch
      %2808 = sbr.rel (0) target = $region53
    $region52: #{self_dd_attn_forward.1} parent=1 // pred_region
      %2809 = dma.done [#allocation4], 32
    $region53: #{self_dd_attn_forward.1} parent=1 // pred_fallthru
      _
    %2810 = vsyncpa [#allocation3], 1
    %2811 = vsyncpa [#allocation4], 1

</llo_original>
